<compile_context>
chip_gen: v7x
topology: tpu7x:2x2x1
jax: 0.10.0
libtpu: 0.0.40
codegen_flags: <defaults>
</compile_context>

<pallas_src>
import math
import functools

import jax
import jax.numpy as jnp
from jax import lax
from jax.experimental import pallas as pl
from jax.experimental.pallas import tpu as pltpu


# ---------------------------------------------------------------------------
# Kernel
# ---------------------------------------------------------------------------
def sde_denoiser_kernel(x_ref, cond_ref, win_ref, wouts_ref, bouts_ref, out_ref,
                        *, n_steps, gamma, seed, chunk, fast,
                        static_steps, step_unroll):
    """Runs all n_steps Euler SDE steps for one lane-dense tile of packed pixels.

    x_ref / out_ref : (CB, TILE)           CB = pack*C channels on sublanes,
                                           packed pixel columns on lanes
    cond_ref        : (n_steps, HB, 1)     HB = pack*hidden; bin_ + temb(step)@wt
    win_ref         : (HB, CB)             block-diag(win^T)
    wouts_ref       : (n_steps, CB, HB)    coef[step] * block-diag(wout^T)
    bouts_ref       : (n_steps, CB, 1)     coef[step] * bout
    """
    delta_t = 1.0 / n_steps
    sigma = math.sqrt(gamma * delta_t) if gamma > 0.0 else 0.0
    if gamma > 0.0:
        # TODO(synk): TPU PRNG won't bitwise-match torch.randn_like and the
        # stream is seeded per grid tile, so gamma>0 output depends on tiling.
        pltpu.prng_seed(seed + pl.program_id(0))

    tile = out_ref.shape[-1]
    num_chunks = tile // chunk

    # Hoist the (tiny) input-projection weight load + cast out of all loops.
    win_f32 = win_ref[...]                                   # (HB, CB)
    win = win_f32.astype(jnp.bfloat16) if fast else win_f32

    def silu(h):
        if fast:
            return h * pl.reciprocal(1.0 + jnp.exp(-h), approx=True)
        return h / (1.0 + jnp.exp(-h))

    def euler_step(step, x, one_minus_coef):
        # x: (CB, chunk) f32.  Denoise:
        #   h = win^T x + (bin_ + temb@wt) ; d = coef * (wout^T silu(h) + bout)
        xin = x.astype(jnp.bfloat16) if fast else x
        h = jnp.dot(win, xin, preferred_element_type=jnp.float32) + cond_ref[step]
        h = silu(h)
        w2 = wouts_ref[step]                                  # (CB, HB)
        if fast:
            h = h.astype(jnp.bfloat16)
            w2 = w2.astype(jnp.bfloat16)
        d = jnp.dot(w2, h, preferred_element_type=jnp.float32)
        return one_minus_coef * x + d + bouts_ref[step]

    @pl.loop(0, num_chunks)
    def _(ci):
        off = pl.multiple_of(ci * chunk, chunk)
        x = x_ref[:, pl.ds(off, chunk)].astype(jnp.float32)   # (CB, chunk)

        if static_steps:
            xs = x
            for step in range(n_steps):
                omc = 1.0 - delta_t / (1.0 - step * delta_t)  # python float
                xs = euler_step(step, xs, omc)
                if gamma > 0.0 and step < n_steps - 1:
                    xs = xs + sigma * pltpu.stateful_normal(xs.shape, jnp.float32)
            xr = xs
        else:
            def body(step, xc):
                t = step.astype(jnp.float32) * delta_t
                omc = 1.0 - delta_t / (1.0 - t)               # scalar
                xc = euler_step(step, xc, omc)
                if gamma > 0.0:
                    noise = pltpu.stateful_normal(xc.shape, jnp.float32)
                    xc = xc + jnp.where(step < n_steps - 1, sigma, 0.0) * noise
                return xc
            xr = lax.fori_loop(0, n_steps, body, x, unroll=step_unroll)

        out_ref[:, pl.ds(off, chunk)] = xr


# ---------------------------------------------------------------------------
# Parameters & hoisted per-step tables
# ---------------------------------------------------------------------------
def init_params(key, C, time_dim, hidden):
    half = time_dim // 2
    inv_freq = jnp.exp(jnp.arange(0, time_dim, 2, dtype=jnp.float32)
                       * (-math.log(10000.0) / time_dim))                # (Td/2,)
    # fold cat([sin, cos]) into a single sin with a +pi/2 phase on the cos half
    invfreq2 = jnp.concatenate([inv_freq, inv_freq]).reshape(1, time_dim)
    phase = jnp.concatenate([jnp.zeros((half,), jnp.float32),
                             jnp.full((half,), math.pi / 2, jnp.float32)
                             ]).reshape(1, time_dim)
    ks = jax.random.split(key, 7)
    s = 0.2
    w1 = jax.random.normal(ks[0], (time_dim, time_dim), jnp.float32) * s
    b1 = jax.random.normal(ks[1], (1, time_dim), jnp.float32) * s
    w2 = jax.random.normal(ks[2], (time_dim, time_dim), jnp.float32) * s
    b2 = jax.random.normal(ks[3], (1, time_dim), jnp.float32) * s
    wt = jax.random.normal(ks[4], (time_dim, hidden), jnp.float32) * s
    win = jax.random.normal(ks[5], (C, hidden), jnp.float32) * s
    bin_ = jnp.zeros((1, hidden), jnp.float32)
    wout = jax.random.normal(ks[6], (hidden, C), jnp.float32) * s
    bout = jnp.zeros((1, C), jnp.float32)
    return (invfreq2, phase, w1, b1, w2, b2, wt, win, bin_, wout, bout)


def _precompute_tables(params, n_steps, pack):
    """Hoisted time conditioning + per-step Euler-scaled output weights."""
    (invfreq2, phase, w1, b1, w2, b2, wt, win, bin_, wout, bout) = params
    C, hidden = win.shape
    delta_t = 1.0 / n_steps
    steps = jnp.arange(n_steps)
    # TODO(synk): n_steps == 1 gives t_e = -delta_t (inherited torch quirk:
    # the last step reuses the embedding computed at step n_steps-2).
    t_e = jnp.minimum(steps, n_steps - 2).astype(jnp.float32) * delta_t
    scaled = t_e * float(n_steps) + 1.0
    pos = jnp.sin(scaled[:, None] * invfreq2 + phase)           # (n_steps, Td)
    h1 = pos @ w1 + b1
    h1 = h1 * jax.nn.sigmoid(h1)
    temb = h1 @ w2 + b2                                         # (n_steps, Td)
    cond = bin_ + temb @ wt                                     # (n_steps, hidden)
    cond = jnp.tile(cond, (1, pack))[:, :, None]                # (n_steps, HB, 1)

    eye = jnp.eye(pack, dtype=jnp.float32)
    win_b = jnp.kron(eye, jnp.transpose(win))                   # (HB, CB)
    wout_b = jnp.kron(eye, jnp.transpose(wout))                 # (CB, HB)
    bout_b = jnp.tile(bout.reshape(C, 1), (pack, 1))            # (CB, 1)

    coefs = delta_t / (1.0 - steps.astype(jnp.float32) * delta_t)
    wouts = coefs[:, None, None] * wout_b[None]                 # (n_steps, CB, HB)
    bouts = coefs[:, None, None] * bout_b[None]                 # (n_steps, CB, 1)
    return cond, win_b, wouts, bouts


# ---------------------------------------------------------------------------
# Wrapper
# ---------------------------------------------------------------------------
def _round_up(v, m):
    return -(-v // m) * m


def _pick_tile(n_cols, requested):
    """256-aligned lane tile; targets >= 4 grid tiles (2 per v7x TensorCore)."""
    tile = _round_up(max(1, min(requested, n_cols)), 256)
    if n_cols >= 4 * 256:
        tile = min(tile, max(256, (n_cols // 4 // 256) * 256))
    return tile


def sde_denoiser_forward(x0_nchw, params, *, n_steps, gamma=0.0, seed=0,
                         pack=2, tile_cols=4096, chunk_cols=256, fast=True,
                         max_static_unroll=32, step_unroll=8):
    """Pallas forward of SDE_denoiser.forward(x0, gamma) (traj=False)."""
    (invfreq2, phase, w1, b1, w2, b2, wt, win, bin_, wout, bout) = params
    B, C, H, W = x0_nchw.shape
    N = B * H * W

    p = max(1, int(pack))
    while N % p != 0:
        p -= 1
    CB = p * C

    # channels-first, pixels lane-dense, p pixels packed per column (sublanes)
    x_cn = jnp.transpose(x0_nchw, (1, 0, 2, 3)).reshape(C, N)
    n_cols = N // p
    x_pk = jnp.transpose(x_cn.reshape(C, n_cols, p), (2, 0, 1)).reshape(CB, n_cols)

    tile = _pick_tile(n_cols, tile_cols)
    n_pad = _round_up(n_cols, tile)
    if n_pad > n_cols:
        x_pk = jnp.pad(x_pk, ((0, 0), (0, n_pad - n_cols)))

    chunk = max(128, (min(chunk_cols, tile) // 128) * 128)
    if tile % chunk != 0:
        chunk = 256 if tile % 256 == 0 else 128

    cond, win_b, wouts, bouts = _precompute_tables(params, n_steps, p)
    consts = (cond, win_b, wouts, bouts)

    def _full_spec(a):
        return pl.BlockSpec(a.shape, lambda i: (0,) * a.ndim)

    block_bytes = CB * tile * 4
    const_bytes = sum(int(a.size) * a.dtype.itemsize for a in consts)
    vmem_bytes = int(min(max(4 * block_bytes + 2 * const_bytes + (8 << 20),
                             16 << 20), 40 << 20))

    kernel = functools.partial(
        sde_denoiser_kernel,
        n_steps=n_steps, gamma=float(gamma), seed=int(seed), chunk=chunk,
        fast=bool(fast),
        static_steps=(n_steps <= max_static_unroll),
        step_unroll=max(1, min(step_unroll, n_steps)))

    out_pk = pl.pallas_call(
        kernel,
        out_shape=jax.ShapeDtypeStruct((CB, n_pad), jnp.float32),
        grid=(n_pad // tile,),
        in_specs=[pl.BlockSpec((CB, tile), lambda i: (0, i))]
                 + [_full_spec(a) for a in consts],
        out_specs=pl.BlockSpec((CB, tile), lambda i: (0, i)),
        compiler_params=pltpu.CompilerParams(
            dimension_semantics=("parallel",),
            vmem_limit_bytes=vmem_bytes),
    )(x_pk, *consts)

    # unpack: (CB, n_pad) -> (C, N) -> (B, C, H, W)
    out_cn = jnp.transpose(out_pk[:, :n_cols].reshape(p, C, n_cols),
                           (1, 2, 0)).reshape(C, N)
    return jnp.transpose(out_cn.reshape(C, B, H, W), (1, 0, 2, 3))


# ---------------------------------------------------------------------------
# Pure-JAX reference (gamma = 0), original layout
# ---------------------------------------------------------------------------
def reference_forward(x0_nchw, params, *, n_steps):
    (invfreq2, phase, w1, b1, w2, b2, wt, win, bin_, wout, bout) = params
    B, C, H, W = x0_nchw.shape
    x = jnp.transpose(x0_nchw, (0, 2, 3, 1)).reshape(B * H * W, C)
    delta_t = 1.0 / n_steps
    for step in range(n_steps):
        t = step * delta_t
        t_e = min(step, n_steps - 2) * delta_t
        pos = jnp.sin((t_e * n_steps + 1.0) * invfreq2 + phase)
        h1 = pos @ w1 + b1
        h1 = h1 * jax.nn.sigmoid(h1)
        temb = h1 @ w2 + b2
        tproj = temb @ wt
        h = x @ win + bin_ + tproj
        h = h * jax.nn.sigmoid(h)
        d = h @ wout + bout
        x = x + delta_t * (d - x) / (1.0 - t)
    return jnp.transpose(x.reshape(B, H, W, C), (0, 3, 1, 2))


if __name__ == "__main__":
    key = jax.random.PRNGKey(0)
    kx, kp = jax.random.split(key)

    B, C, H, W = 2, 4, 16, 16
    time_dim, hidden, n_steps = 32, 32, 4

    x0 = jax.random.normal(kx, (B, C, H, W), jnp.float32)
    params = init_params(kp, C, time_dim, hidden)

    ref = reference_forward(x0, params, n_steps=n_steps)

    # exact path (f32 MXU operands, exact sigmoid): tight semantics check
    out_f32 = jax.block_until_ready(
        sde_denoiser_forward(x0, params, n_steps=n_steps, gamma=0.0, fast=False))
    assert out_f32.shape == (B, C, H, W) and out_f32.dtype == jnp.float32
    assert jnp.allclose(out_f32, ref, atol=1e-4, rtol=1e-4), \
        "f32 kernel mismatch vs JAX reference"

    # fast path (bf16 MXU operands + approx-reciprocal SiLU), static step unroll
    out_fast = jax.block_until_ready(
        sde_denoiser_forward(x0, params, n_steps=n_steps, gamma=0.0, fast=True))
    assert jnp.allclose(out_fast, ref, atol=3e-2, rtol=3e-2), \
        "bf16 kernel mismatch vs JAX reference"

    # fori-loop step path (n_steps > max_static_unroll) + multi-chunk lane loop
    n_steps_big = 40
    ref_big = reference_forward(x0, params, n_steps=n_steps_big)
    out_big = jax.block_until_ready(
        sde_denoiser_forward(x0, params, n_steps=n_steps_big, gamma=0.0,
                             fast=True, chunk_cols=128))
    assert jnp.allclose(out_big, ref_big, atol=3e-2, rtol=3e-2), \
        "fori-loop kernel mismatch vs JAX reference"

    print("KERNEL_OK")
</pallas_src>

<mosaic_0001>
module attributes {stable_mosaic.version = 11 : i64} {
  func.func @sde_denoiser_kernel(%arg0: i32, %arg1: memref<8x256xf32, #tpu.memory_space<vmem>>, %arg2: memref<4x64x1xf32, #tpu.memory_space<vmem>>, %arg3: memref<64x8xf32, #tpu.memory_space<vmem>>, %arg4: memref<4x8x64xf32, #tpu.memory_space<vmem>>, %arg5: memref<4x8x1xf32, #tpu.memory_space<vmem>>, %arg6: memref<8x256xf32, #tpu.memory_space<vmem>>) attributes {dimension_semantics = [#tpu.dimension_semantics<parallel>], iteration_bounds = array<i64: 1>, scalar_prefetch = 0 : i64, scratch_operands = 0 : i64, tpu.core_type = #tpu.core_type<tc>, window_params = [{transform_indices = @transform_0, window_bounds = array<i64: 8, 256>}, {pipeline_mode = #tpu.pipeline_mode<synchronous>, transform_indices = @transform_1, window_bounds = array<i64: 4, 64, 1>}, {pipeline_mode = #tpu.pipeline_mode<synchronous>, transform_indices = @transform_2, window_bounds = array<i64: 64, 8>}, {pipeline_mode = #tpu.pipeline_mode<synchronous>, transform_indices = @transform_3, window_bounds = array<i64: 4, 8, 64>}, {pipeline_mode = #tpu.pipeline_mode<synchronous>, transform_indices = @transform_4, window_bounds = array<i64: 4, 8, 1>}, {transform_indices = @transform_5, window_bounds = array<i64: 8, 256>}]} {
    %c0 = arith.constant 0 : index
    %c0_0 = arith.constant 0 : index
    %0 = vector.load %arg3[%c0, %c0_0] : memref<64x8xf32, #tpu.memory_space<vmem>>, vector<64x8xf32>
    %c0_i32 = arith.constant 0 : i32
    %c1_i32 = arith.constant 1 : i32
    %1 = arith.muli %c0_i32, %c1_i32 : i32
    %c0_i32_1 = arith.constant 0 : i32
    %2 = arith.addi %c0_i32_1, %1 : i32
    %c256_i32 = arith.constant 256 : i32
    %3 = arith.muli %2, %c256_i32 : i32
    %4 = tpu.assume_multiple %3, 256 : i32
    %c0_2 = arith.constant 0 : index
    %5 = arith.index_cast %4 : i32 to index
    %6 = vector.load %arg1[%c0_2, %5] : memref<8x256xf32, #tpu.memory_space<vmem>>, vector<8x256xf32>
    %cst = arith.constant dense<0.000000e+00> : vector<64x256xf32>
    %7 = tpu.matmul %0, %6, %cst {dimension_numbers = #tpu.dot_dimension_numbers<[1], [0], [0], [1], [0, 0, 1, 1], [], []>} : vector<64x8xf32>, vector<8x256xf32>, vector<64x256xf32> -> vector<64x256xf32>
    %c0_3 = arith.constant 0 : index
    %c0_4 = arith.constant 0 : index
    %c0_5 = arith.constant 0 : index
    %8 = vector.load %arg2[%c0_3, %c0_4, %c0_5] : memref<4x64x1xf32, #tpu.memory_space<vmem>>, vector<1x64x1xf32>
    %9 = vector.shape_cast %8 : vector<1x64x1xf32> to vector<64x1xf32>
    %10 = vector.broadcast %9 : vector<64x1xf32> to vector<64x256xf32>
    %11 = arith.addf %7, %10 : vector<64x256xf32>
    %cst_6 = arith.constant 0.000000e+00 : f32
    %12 = vector.broadcast %cst_6 : f32 to vector<64x256xf32>
    %13 = arith.subf %12, %11 : vector<64x256xf32>
    %14 = math.exp %13 : vector<64x256xf32>
    %cst_7 = arith.constant 1.000000e+00 : f32
    %15 = vector.broadcast %cst_7 : f32 to vector<64x256xf32>
    %16 = arith.addf %15, %14 : vector<64x256xf32>
    %17 = arith.divf %11, %16 : vector<64x256xf32>
    %c0_8 = arith.constant 0 : index
    %c0_9 = arith.constant 0 : index
    %c0_10 = arith.constant 0 : index
    %18 = vector.load %arg4[%c0_8, %c0_9, %c0_10] : memref<4x8x64xf32, #tpu.memory_space<vmem>>, vector<1x8x64xf32>
    %19 = vector.shape_cast %18 : vector<1x8x64xf32> to vector<8x64xf32>
    %cst_11 = arith.constant dense<0.000000e+00> : vector<8x256xf32>
    %20 = tpu.matmul %19, %17, %cst_11 {dimension_numbers = #tpu.dot_dimension_numbers<[1], [0], [0], [1], [0, 0, 1, 1], [], []>} : vector<8x64xf32>, vector<64x256xf32>, vector<8x256xf32> -> vector<8x256xf32>
    %cst_12 = arith.constant 7.500000e-01 : f32
    %21 = vector.broadcast %cst_12 : f32 to vector<8x256xf32>
    %22 = arith.mulf %21, %6 : vector<8x256xf32>
    %23 = arith.addf %22, %20 : vector<8x256xf32>
    %c0_13 = arith.constant 0 : index
    %c0_14 = arith.constant 0 : index
    %c0_15 = arith.constant 0 : index
    %24 = vector.load %arg5[%c0_13, %c0_14, %c0_15] : memref<4x8x1xf32, #tpu.memory_space<vmem>>, vector<1x8x1xf32>
    %25 = vector.shape_cast %24 : vector<1x8x1xf32> to vector<8x1xf32>
    %26 = vector.broadcast %25 : vector<8x1xf32> to vector<8x256xf32>
    %27 = arith.addf %23, %26 : vector<8x256xf32>
    %cst_16 = arith.constant dense<0.000000e+00> : vector<64x256xf32>
    %28 = tpu.matmul %0, %27, %cst_16 {dimension_numbers = #tpu.dot_dimension_numbers<[1], [0], [0], [1], [0, 0, 1, 1], [], []>} : vector<64x8xf32>, vector<8x256xf32>, vector<64x256xf32> -> vector<64x256xf32>
    %c1 = arith.constant 1 : index
    %c0_17 = arith.constant 0 : index
    %c0_18 = arith.constant 0 : index
    %29 = vector.load %arg2[%c1, %c0_17, %c0_18] : memref<4x64x1xf32, #tpu.memory_space<vmem>>, vector<1x64x1xf32>
    %30 = vector.shape_cast %29 : vector<1x64x1xf32> to vector<64x1xf32>
    %31 = vector.broadcast %30 : vector<64x1xf32> to vector<64x256xf32>
    %32 = arith.addf %28, %31 : vector<64x256xf32>
    %cst_19 = arith.constant 0.000000e+00 : f32
    %33 = vector.broadcast %cst_19 : f32 to vector<64x256xf32>
    %34 = arith.subf %33, %32 : vector<64x256xf32>
    %35 = math.exp %34 : vector<64x256xf32>
    %cst_20 = arith.constant 1.000000e+00 : f32
    %36 = vector.broadcast %cst_20 : f32 to vector<64x256xf32>
    %37 = arith.addf %36, %35 : vector<64x256xf32>
    %38 = arith.divf %32, %37 : vector<64x256xf32>
    %c1_21 = arith.constant 1 : index
    %c0_22 = arith.constant 0 : index
    %c0_23 = arith.constant 0 : index
    %39 = vector.load %arg4[%c1_21, %c0_22, %c0_23] : memref<4x8x64xf32, #tpu.memory_space<vmem>>, vector<1x8x64xf32>
    %40 = vector.shape_cast %39 : vector<1x8x64xf32> to vector<8x64xf32>
    %cst_24 = arith.constant dense<0.000000e+00> : vector<8x256xf32>
    %41 = tpu.matmul %40, %38, %cst_24 {dimension_numbers = #tpu.dot_dimension_numbers<[1], [0], [0], [1], [0, 0, 1, 1], [], []>} : vector<8x64xf32>, vector<64x256xf32>, vector<8x256xf32> -> vector<8x256xf32>
    %cst_25 = arith.constant 0.666666686 : f32
    %42 = vector.broadcast %cst_25 : f32 to vector<8x256xf32>
    %43 = arith.mulf %42, %27 : vector<8x256xf32>
    %44 = arith.addf %43, %41 : vector<8x256xf32>
    %c1_26 = arith.constant 1 : index
    %c0_27 = arith.constant 0 : index
    %c0_28 = arith.constant 0 : index
    %45 = vector.load %arg5[%c1_26, %c0_27, %c0_28] : memref<4x8x1xf32, #tpu.memory_space<vmem>>, vector<1x8x1xf32>
    %46 = vector.shape_cast %45 : vector<1x8x1xf32> to vector<8x1xf32>
    %47 = vector.broadcast %46 : vector<8x1xf32> to vector<8x256xf32>
    %48 = arith.addf %44, %47 : vector<8x256xf32>
    %cst_29 = arith.constant dense<0.000000e+00> : vector<64x256xf32>
    %49 = tpu.matmul %0, %48, %cst_29 {dimension_numbers = #tpu.dot_dimension_numbers<[1], [0], [0], [1], [0, 0, 1, 1], [], []>} : vector<64x8xf32>, vector<8x256xf32>, vector<64x256xf32> -> vector<64x256xf32>
    %c2 = arith.constant 2 : index
    %c0_30 = arith.constant 0 : index
    %c0_31 = arith.constant 0 : index
    %50 = vector.load %arg2[%c2, %c0_30, %c0_31] : memref<4x64x1xf32, #tpu.memory_space<vmem>>, vector<1x64x1xf32>
    %51 = vector.shape_cast %50 : vector<1x64x1xf32> to vector<64x1xf32>
    %52 = vector.broadcast %51 : vector<64x1xf32> to vector<64x256xf32>
    %53 = arith.addf %49, %52 : vector<64x256xf32>
    %cst_32 = arith.constant 0.000000e+00 : f32
    %54 = vector.broadcast %cst_32 : f32 to vector<64x256xf32>
    %55 = arith.subf %54, %53 : vector<64x256xf32>
    %56 = math.exp %55 : vector<64x256xf32>
    %cst_33 = arith.constant 1.000000e+00 : f32
    %57 = vector.broadcast %cst_33 : f32 to vector<64x256xf32>
    %58 = arith.addf %57, %56 : vector<64x256xf32>
    %59 = arith.divf %53, %58 : vector<64x256xf32>
    %c2_34 = arith.constant 2 : index
    %c0_35 = arith.constant 0 : index
    %c0_36 = arith.constant 0 : index
    %60 = vector.load %arg4[%c2_34, %c0_35, %c0_36] : memref<4x8x64xf32, #tpu.memory_space<vmem>>, vector<1x8x64xf32>
    %61 = vector.shape_cast %60 : vector<1x8x64xf32> to vector<8x64xf32>
    %cst_37 = arith.constant dense<0.000000e+00> : vector<8x256xf32>
    %62 = tpu.matmul %61, %59, %cst_37 {dimension_numbers = #tpu.dot_dimension_numbers<[1], [0], [0], [1], [0, 0, 1, 1], [], []>} : vector<8x64xf32>, vector<64x256xf32>, vector<8x256xf32> -> vector<8x256xf32>
    %cst_38 = arith.constant 5.000000e-01 : f32
    %63 = vector.broadcast %cst_38 : f32 to vector<8x256xf32>
    %64 = arith.mulf %63, %48 : vector<8x256xf32>
    %65 = arith.addf %64, %62 : vector<8x256xf32>
    %c2_39 = arith.constant 2 : index
    %c0_40 = arith.constant 0 : index
    %c0_41 = arith.constant 0 : index
    %66 = vector.load %arg5[%c2_39, %c0_40, %c0_41] : memref<4x8x1xf32, #tpu.memory_space<vmem>>, vector<1x8x1xf32>
    %67 = vector.shape_cast %66 : vector<1x8x1xf32> to vector<8x1xf32>
    %68 = vector.broadcast %67 : vector<8x1xf32> to vector<8x256xf32>
    %69 = arith.addf %65, %68 : vector<8x256xf32>
    %cst_42 = arith.constant dense<0.000000e+00> : vector<64x256xf32>
    %70 = tpu.matmul %0, %69, %cst_42 {dimension_numbers = #tpu.dot_dimension_numbers<[1], [0], [0], [1], [0, 0, 1, 1], [], []>} : vector<64x8xf32>, vector<8x256xf32>, vector<64x256xf32> -> vector<64x256xf32>
    %c3 = arith.constant 3 : index
    %c0_43 = arith.constant 0 : index
    %c0_44 = arith.constant 0 : index
    %71 = vector.load %arg2[%c3, %c0_43, %c0_44] : memref<4x64x1xf32, #tpu.memory_space<vmem>>, vector<1x64x1xf32>
    %72 = vector.shape_cast %71 : vector<1x64x1xf32> to vector<64x1xf32>
    %73 = vector.broadcast %72 : vector<64x1xf32> to vector<64x256xf32>
    %74 = arith.addf %70, %73 : vector<64x256xf32>
    %cst_45 = arith.constant 0.000000e+00 : f32
    %75 = vector.broadcast %cst_45 : f32 to vector<64x256xf32>
    %76 = arith.subf %75, %74 : vector<64x256xf32>
    %77 = math.exp %76 : vector<64x256xf32>
    %cst_46 = arith.constant 1.000000e+00 : f32
    %78 = vector.broadcast %cst_46 : f32 to vector<64x256xf32>
    %79 = arith.addf %78, %77 : vector<64x256xf32>
    %80 = arith.divf %74, %79 : vector<64x256xf32>
    %c3_47 = arith.constant 3 : index
    %c0_48 = arith.constant 0 : index
    %c0_49 = arith.constant 0 : index
    %81 = vector.load %arg4[%c3_47, %c0_48, %c0_49] : memref<4x8x64xf32, #tpu.memory_space<vmem>>, vector<1x8x64xf32>
    %82 = vector.shape_cast %81 : vector<1x8x64xf32> to vector<8x64xf32>
    %cst_50 = arith.constant dense<0.000000e+00> : vector<8x256xf32>
    %83 = tpu.matmul %82, %80, %cst_50 {dimension_numbers = #tpu.dot_dimension_numbers<[1], [0], [0], [1], [0, 0, 1, 1], [], []>} : vector<8x64xf32>, vector<64x256xf32>, vector<8x256xf32> -> vector<8x256xf32>
    %cst_51 = arith.constant 0.000000e+00 : f32
    %84 = vector.broadcast %cst_51 : f32 to vector<8x256xf32>
    %85 = arith.mulf %84, %69 : vector<8x256xf32>
    %86 = arith.addf %85, %83 : vector<8x256xf32>
    %c3_52 = arith.constant 3 : index
    %c0_53 = arith.constant 0 : index
    %c0_54 = arith.constant 0 : index
    %87 = vector.load %arg5[%c3_52, %c0_53, %c0_54] : memref<4x8x1xf32, #tpu.memory_space<vmem>>, vector<1x8x1xf32>
    %88 = vector.shape_cast %87 : vector<1x8x1xf32> to vector<8x1xf32>
    %89 = vector.broadcast %88 : vector<8x1xf32> to vector<8x256xf32>
    %90 = arith.addf %86, %89 : vector<8x256xf32>
    %c0_55 = arith.constant 0 : index
    %91 = arith.index_cast %4 : i32 to index
    %92 = vector.load %arg6[%c0_55, %91] : memref<8x256xf32, #tpu.memory_space<vmem>>, vector<8x256xf32>
    tpu.vector_store %arg6[%c0_55, %91], %90 {strides = array<i32>} : memref<8x256xf32, #tpu.memory_space<vmem>>, vector<8x256xf32>,
    %c1_i32_56 = arith.constant 1 : i32
    return
  }
  func.func @transform_0(%arg0: i32) -> (i32, i32) {
    %c0_i32 = arith.constant 0 : i32
    %c0_i32_0 = arith.constant 0 : i32
    return %c0_i32, %arg0 : i32, i32
  }
  func.func @transform_1(%arg0: i32) -> (i32, i32, i32) {
    %c0_i32 = arith.constant 0 : i32
    %c0_i32_0 = arith.constant 0 : i32
    %c0_i32_1 = arith.constant 0 : i32
    %c0_i32_2 = arith.constant 0 : i32
    return %c0_i32, %c0_i32_0, %c0_i32_1 : i32, i32, i32
  }
  func.func @transform_2(%arg0: i32) -> (i32, i32) {
    %c0_i32 = arith.constant 0 : i32
    %c0_i32_0 = arith.constant 0 : i32
    %c0_i32_1 = arith.constant 0 : i32
    return %c0_i32, %c0_i32_0 : i32, i32
  }
  func.func @transform_3(%arg0: i32) -> (i32, i32, i32) {
    %c0_i32 = arith.constant 0 : i32
    %c0_i32_0 = arith.constant 0 : i32
    %c0_i32_1 = arith.constant 0 : i32
    %c0_i32_2 = arith.constant 0 : i32
    return %c0_i32, %c0_i32_0, %c0_i32_1 : i32, i32, i32
  }
  func.func @transform_4(%arg0: i32) -> (i32, i32, i32) {
    %c0_i32 = arith.constant 0 : i32
    %c0_i32_0 = arith.constant 0 : i32
    %c0_i32_1 = arith.constant 0 : i32
    %c0_i32_2 = arith.constant 0 : i32
    return %c0_i32, %c0_i32_0, %c0_i32_1 : i32, i32, i32
  }
  func.func @transform_5(%arg0: i32) -> (i32, i32) {
    %c0_i32 = arith.constant 0 : i32
    %c0_i32_0 = arith.constant 0 : i32
    return %c0_i32, %arg0 : i32, i32
  }
}

</mosaic_0001>

<llo_original>
// kernel: tpu_custom_call.1
$region0: #{tpu_custom_call.1}
  #allocation0 [shape = 'u32[]', space=smem, size = 0x4, offset = 0x4, fixed_abs, tag = 'smem constant byte address 0x4 - core index']
  #allocation1 [shape = 'u32[144,128]{1,0:T(1,128)}', space=vmem, size = 0x12000, scoped, tag = 'internal scratch']
  %s0 = inlined_call_operand.vmem [shape: f32[8,256], index: 0, kind: input, shape index: {}]
  %s1 = inlined_call_operand.vmem [shape: f32[4,64,1], index: 1, kind: input, shape index: {}]
  %s2 = inlined_call_operand.vmem [shape: f32[64,8], index: 2, kind: input, shape index: {}]
  %s3 = inlined_call_operand.vmem [shape: f32[4,8,64], index: 3, kind: input, shape index: {}]
  %s4 = inlined_call_operand.vmem [shape: f32[4,8,1], index: 4, kind: input, shape index: {}]
  %s5 = inlined_call_operand.hbm [shape: f32[8,256], index: 5, kind: output, shape index: {}]
  %s6 = sld [smem:[#allocation0]]
  $region30: #{tpu_custom_call.1} parent=0
    _
  %s8 = ssub.s32 1, %s6
  %s9 = scalar_select 0, %s8, %s6
  $region1: #{tpu_custom_call.1} parent=0
    #allocation2 [shape = 'u8[8192]{0}', space=vmem, size = 0x2000, scoped, tag = 'output window, operand 0, single buffered']
    #allocation3 [shape = 's32[1]{0}', space=sflag, size = 0x4, scoped, tag = 'scoped memory for tpu_custom_call.1']
    %10 = vsyncpa [#allocation3], 0
    // Predicated region
    $region2: #{tpu_custom_call.1} parent=1 // pred_check
      _
    $region3: #{tpu_custom_call.1} parent=1 // pred_check_branch
      %12 = sbr.rel (0) target = $region5
    $region4: #{tpu_custom_call.1} parent=1 // pred_region
      _
    $region5: #{tpu_custom_call.1} parent=1 // pred_fallthru
      _
    // Predicated region
    $region6: #{tpu_custom_call.1} parent=1 // pred_check
      _
    $region7: #{tpu_custom_call.1} parent=1 // pred_check_branch
      %14 = sbr.rel (0) target = $region9
    $region8: #{tpu_custom_call.1} parent=1 // pred_region
      _
    $region9: #{tpu_custom_call.1} parent=1 // pred_fallthru
      _
    // Predicated region
    $region10: #{tpu_custom_call.1} parent=1 // pred_check
      _
    $region11: #{tpu_custom_call.1} parent=1 // pred_check_branch
      %16 = sbr.rel (0) target = $region13
    $region12: #{tpu_custom_call.1} parent=1 // pred_region
      _
    $region13: #{tpu_custom_call.1} parent=1 // pred_fallthru
      _
    // Predicated region
    $region14: #{tpu_custom_call.1} parent=1 // pred_check
      _
    $region15: #{tpu_custom_call.1} parent=1 // pred_check_branch
      %18 = sbr.rel (0) target = $region17
    $region16: #{tpu_custom_call.1} parent=1 // pred_region
      _
    $region17: #{tpu_custom_call.1} parent=1 // pred_fallthru
      _
    // Predicated region
    $region18: #{tpu_custom_call.1} parent=1 // pred_check
      _
    $region19: #{tpu_custom_call.1} parent=1 // pred_check_branch
      %20 = sbr.rel (0) target = $region21
    $region20: #{tpu_custom_call.1} parent=1 // pred_region
      _
    $region21: #{tpu_custom_call.1} parent=1 // pred_fallthru
      _
    %v21 = vld [vmem:[%s2] sm:$0xff]
    %v22 = vld [vmem:[%s2 + $0x8] sm:$0xff]
    %v23 = vld [vmem:[%s2 + $0x10] sm:$0xff]
    %v24 = vld [vmem:[%s2 + $0x18] sm:$0xff]
    %v25 = vld [vmem:[%s2 + $0x20] sm:$0xff]
    %v26 = vld [vmem:[%s2 + $0x28] sm:$0xff]
    %v27 = vld [vmem:[%s2 + $0x30] sm:$0xff]
    %v28 = vld [vmem:[%s2 + $0x38] sm:$0xff]
    %v29 = vld [vmem:[%s0] sm:$0xff]
    %v30 = vld [vmem:[%s0 + $0x8] sm:$0xff]
    %v31 = vld [vmem:[%s1] sm:$0xff]
    %v32 = vld [vmem:[%s1 + $0x8] sm:$0xff]
    %v33 = vld [vmem:[%s1 + $0x10] sm:$0xff]
    %v34 = vld [vmem:[%s1 + $0x18] sm:$0xff]
    %v35 = vld [vmem:[%s1 + $0x20] sm:$0xff]
    %v36 = vld [vmem:[%s1 + $0x28] sm:$0xff]
    %v37 = vld [vmem:[%s1 + $0x30] sm:$0xff]
    %v38 = vld [vmem:[%s1 + $0x38] sm:$0xff]
    %40 = vset.pattern.permute.xlu0 0
    %41 = vperm.xlu0 %40, %v31
    %v42 = vpop.permute.xlu0 %41
    %45 = vset.pattern.permute.xlu0 0
    %46 = vperm.xlu0 %45, %v32
    %v47 = vpop.permute.xlu0 %46
    %50 = vset.pattern.permute.xlu0 0
    %51 = vperm.xlu0 %50, %v33
    %v52 = vpop.permute.xlu0 %51
    %55 = vset.pattern.permute.xlu0 0
    %56 = vperm.xlu0 %55, %v34
    %v57 = vpop.permute.xlu0 %56
    %60 = vset.pattern.permute.xlu0 0
    %61 = vperm.xlu0 %60, %v35
    %v62 = vpop.permute.xlu0 %61
    %65 = vset.pattern.permute.xlu0 0
    %66 = vperm.xlu0 %65, %v36
    %v67 = vpop.permute.xlu0 %66
    %70 = vset.pattern.permute.xlu0 0
    %71 = vperm.xlu0 %70, %v37
    %v72 = vpop.permute.xlu0 %71
    %75 = vset.pattern.permute.xlu0 0
    %76 = vperm.xlu0 %75, %v38
    %v77 = vpop.permute.xlu0 %76
    %vm79 = vcmask 64512
    %v81 = vsel %vm79, %v21, 0
    %v84 = vsel %vm79, %v22, 0
    %v87 = vsel %vm79, %v23, 0
    %v90 = vsel %vm79, %v24, 0
    %v93 = vsel %vm79, %v25, 0
    %v96 = vsel %vm79, %v26, 0
    %v99 = vsel %vm79, %v27, 0
    %v102 = vsel %vm79, %v28, 0
    %104 = vmatprep.subr.mxu0 %v30
    %105 = vmatpush1.msra.mxu0 %v29
    %106 = vmatprep.subr.mxu0 0.0
    %107 = vmatpush1.msra.mxu0 0.0
    %108 = vmatprep.subr.mxu0 0.0
    %109 = vmatpush1.msra.mxu0 0.0
    %110 = vmatprep.subr.mxu0 0.0
    %111 = vmatpush1.msra.mxu0 0.0
    %112 = vmatprep.subr.mxu0 0.0
    %113 = vmatpush1.msra.mxu0 0.0
    %114 = vmatprep.subr.mxu0 0.0
    %115 = vmatpush1.msra.mxu0 0.0
    %116 = vmatprep.subr.mxu0 0.0
    %117 = vmatpush1.msra.mxu0 0.0
    %118 = vmatprep.subr.mxu0 0.0
    %119 = vmatpush1.msra.mxu0 0.0
    %120 = vmatprep.subr.mxu0 0.0
    %121 = vmatpush1.msra.mxu0 0.0
    %122 = vmatprep.subr.mxu0 0.0
    %123 = vmatpush1.msra.mxu0 0.0
    %124 = vmatprep.subr.mxu0 0.0
    %125 = vmatpush1.msra.mxu0 0.0
    %126 = vmatprep.subr.mxu0 0.0
    %127 = vmatpush1.msra.mxu0 0.0
    %128 = vmatprep.subr.mxu0 0.0
    %129 = vmatpush1.msra.mxu0 0.0
    %130 = vmatprep.subr.mxu0 0.0
    %131 = vmatpush1.msra.mxu0 0.0
    %132 = vmatprep.subr.mxu0 0.0
    %133 = vmatpush1.msra.mxu0 0.0
    %134 = vmatprep.subr.mxu0 0.0
    %135 = vmatpush1.msra.mxu0 0.0
    %136 = vmatprep.subr.mxu0 0.0
    %137 = vmatpush1.msra.mxu0 0.0
    %138 = vmatprep.subr.mxu0 0.0
    %139 = vmatpush1.msra.mxu0 0.0
    %140 = vmatprep.subr.mxu0 0.0
    %141 = vmatpush1.msra.mxu0 0.0
    %142 = vmatprep.subr.mxu0 0.0
    %143 = vmatpush1.msra.mxu0 0.0
    %144 = vmatprep.subr.mxu0 0.0
    %145 = vmatpush1.msra.mxu0 0.0
    %146 = vmatprep.subr.mxu0 0.0
    %147 = vmatpush1.msra.mxu0 0.0
    %148 = vmatprep.subr.mxu0 0.0
    %149 = vmatpush1.msra.mxu0 0.0
    %150 = vmatprep.subr.mxu0 0.0
    %151 = vmatpush1.msra.mxu0 0.0
    %152 = vmatprep.subr.mxu0 0.0
    %153 = vmatpush1.msra.mxu0 0.0
    %154 = vmatprep.subr.mxu0 0.0
    %155 = vmatpush1.msra.mxu0 0.0
    %156 = vmatprep.subr.mxu0 0.0
    %157 = vmatpush1.msra.mxu0 0.0
    %158 = vmatprep.subr.mxu0 0.0
    %159 = vmatpush1.msra.mxu0 0.0
    %160 = vmatprep.subr.mxu0 0.0
    %161 = vmatpush1.msra.mxu0 0.0
    %162 = vmatprep.subr.mxu0 0.0
    %163 = vmatpush1.msra.mxu0 0.0
    %164 = vmatprep.subr.mxu0 0.0
    %165 = vmatpush1.msra.mxu0 0.0
    %166 = vmatprep.subr.mxu0 0.0
    %167 = vmatpush1.msra.mxu0 0.0
    %168 = vmatprep.mubr.f32.mxu0 0.0
    %169 = vmatmul.mubr.f32.gmra.mrb[0].mxu0 %v81
    %v170 = vpop.f32.mrb[0].mxu0
    %v171 = vadd.f32 %v42, %v170
    %v172 = vpop.f32.mrb[0].mxu0
    %v173 = vadd.f32 %v42, %v172
    %174 = vmatprep.mubr.f32.mxu0 0.0
    %175 = vmatmul.mubr.f32.gmra.mrb[0].mxu0 %v84
    %v176 = vpop.f32.mrb[0].mxu0
    %v177 = vadd.f32 %v47, %v176
    %v178 = vpop.f32.mrb[0].mxu0
    %v179 = vadd.f32 %v47, %v178
    %180 = vmatprep.mubr.f32.mxu0 0.0
    %181 = vmatmul.mubr.f32.gmra.mrb[0].mxu0 %v87
    %v182 = vpop.f32.mrb[0].mxu0
    %v183 = vadd.f32 %v52, %v182
    %v184 = vpop.f32.mrb[0].mxu0
    %v185 = vadd.f32 %v52, %v184
    %186 = vmatprep.mubr.f32.mxu0 0.0
    %187 = vmatmul.mubr.f32.gmra.mrb[0].mxu0 %v90
    %v188 = vpop.f32.mrb[0].mxu0
    %v189 = vadd.f32 %v57, %v188
    %v190 = vpop.f32.mrb[0].mxu0
    %v191 = vadd.f32 %v57, %v190
    %192 = vmatprep.mubr.f32.mxu0 0.0
    %193 = vmatmul.mubr.f32.gmra.mrb[0].mxu0 %v93
    %v194 = vpop.f32.mrb[0].mxu0
    %v195 = vadd.f32 %v62, %v194
    %v196 = vpop.f32.mrb[0].mxu0
    %v197 = vadd.f32 %v62, %v196
    %198 = vmatprep.mubr.f32.mxu0 0.0
    %199 = vmatmul.mubr.f32.gmra.mrb[0].mxu0 %v96
    %v200 = vpop.f32.mrb[0].mxu0
    %v201 = vadd.f32 %v67, %v200
    %v202 = vpop.f32.mrb[0].mxu0
    %v203 = vadd.f32 %v67, %v202
    %204 = vmatprep.mubr.f32.mxu0 0.0
    %205 = vmatmul.mubr.f32.gmra.mrb[0].mxu0 %v99
    %v206 = vpop.f32.mrb[0].mxu0
    %v207 = vadd.f32 %v72, %v206
    %v208 = vpop.f32.mrb[0].mxu0
    %v209 = vadd.f32 %v72, %v208
    %210 = vmatprep.mubr.f32.mxu0 0.0
    %211 = vmatmul.mubr.f32.gmra.mrb[0].mxu0 %v102
    %v212 = vpop.f32.mrb[0].mxu0
    %v213 = vadd.f32 %v77, %v212
    %v214 = vpop.f32.mrb[0].mxu0
    %v215 = vadd.f32 %v77, %v214
    %216 = vdwg.mxu0
    %v217 = vsub.f32 0.0, %v171
    %v218 = vsub.f32 0.0, %v173
    %v219 = vsub.f32 0.0, %v177
    %v220 = vsub.f32 0.0, %v179
    %v221 = vsub.f32 0.0, %v183
    %v222 = vsub.f32 0.0, %v185
    %v223 = vsub.f32 0.0, %v189
    %v224 = vsub.f32 0.0, %v191
    %v225 = vsub.f32 0.0, %v195
    %v226 = vsub.f32 0.0, %v197
    %v227 = vsub.f32 0.0, %v201
    %v228 = vsub.f32 0.0, %v203
    %v229 = vsub.f32 0.0, %v207
    %v230 = vsub.f32 0.0, %v209
    %v231 = vsub.f32 0.0, %v213
    %v232 = vsub.f32 0.0, %v215
    %v233 = vmul.f32 %v217, 1.442695
    %v234 = vpow.pop %v233
    %v235 = vmul.f32 %v218, 1.442695
    %v236 = vpow.pop %v235
    %v237 = vmul.f32 %v219, 1.442695
    %v238 = vpow.pop %v237
    %v239 = vmul.f32 %v220, 1.442695
    %v240 = vpow.pop %v239
    %v241 = vmul.f32 %v221, 1.442695
    %v242 = vpow.pop %v241
    %v243 = vmul.f32 %v222, 1.442695
    %v244 = vpow.pop %v243
    %v245 = vmul.f32 %v223, 1.442695
    %v246 = vpow.pop %v245
    %v247 = vmul.f32 %v224, 1.442695
    %v248 = vpow.pop %v247
    %v249 = vmul.f32 %v225, 1.442695
    %v250 = vpow.pop %v249
    %v251 = vmul.f32 %v226, 1.442695
    %v252 = vpow.pop %v251
    %v253 = vmul.f32 %v227, 1.442695
    %v254 = vpow.pop %v253
    %v255 = vmul.f32 %v228, 1.442695
    %v256 = vpow.pop %v255
    %v257 = vmul.f32 %v229, 1.442695
    %v258 = vpow.pop %v257
    %v259 = vmul.f32 %v230, 1.442695
    %v260 = vpow.pop %v259
    %v261 = vmul.f32 %v231, 1.442695
    %v262 = vpow.pop %v261
    %v263 = vmul.f32 %v232, 1.442695
    %v264 = vpow.pop %v263
    %v265 = vadd.f32 %v234, 1.0
    %v266 = vadd.f32 %v236, 1.0
    %v267 = vadd.f32 %v238, 1.0
    %v268 = vadd.f32 %v240, 1.0
    %v269 = vadd.f32 %v242, 1.0
    %v270 = vadd.f32 %v244, 1.0
    %v271 = vadd.f32 %v246, 1.0
    %v272 = vadd.f32 %v248, 1.0
    %v273 = vadd.f32 %v250, 1.0
    %v274 = vadd.f32 %v252, 1.0
    %v275 = vadd.f32 %v254, 1.0
    %v276 = vadd.f32 %v256, 1.0
    %v277 = vadd.f32 %v258, 1.0
    %v278 = vadd.f32 %v260, 1.0
    %v279 = vadd.f32 %v262, 1.0
    %v280 = vadd.f32 %v264, 1.0
    %v281 = vrcp.pop %v265
    %v282 = vmul.f32 %v171, %v281
    %v283 = vrcp.pop %v266
    %v284 = vmul.f32 %v173, %v283
    %v285 = vrcp.pop %v267
    %v286 = vmul.f32 %v177, %v285
    %v287 = vrcp.pop %v268
    %v288 = vmul.f32 %v179, %v287
    %v289 = vrcp.pop %v269
    %v290 = vmul.f32 %v183, %v289
    %v291 = vrcp.pop %v270
    %v292 = vmul.f32 %v185, %v291
    %v293 = vrcp.pop %v271
    %v294 = vmul.f32 %v189, %v293
    %v295 = vrcp.pop %v272
    %v296 = vmul.f32 %v191, %v295
    %v297 = vrcp.pop %v273
    %v298 = vmul.f32 %v195, %v297
    %v299 = vrcp.pop %v274
    %v300 = vmul.f32 %v197, %v299
    %v301 = vrcp.pop %v275
    %v302 = vmul.f32 %v201, %v301
    %v303 = vrcp.pop %v276
    %v304 = vmul.f32 %v203, %v303
    %v305 = vrcp.pop %v277
    %v306 = vmul.f32 %v207, %v305
    %v307 = vrcp.pop %v278
    %v308 = vmul.f32 %v209, %v307
    %v309 = vrcp.pop %v279
    %v310 = vmul.f32 %v213, %v309
    %v311 = vrcp.pop %v280
    %v312 = vmul.f32 %v215, %v311
    %v313 = vld [vmem:[%s3] sm:$0xff]
    %vm314 = vcmask 523264
    %v316 = vsel %vm314, %v313, 0
    %318 = vmatprep.subr.mxu0 %v284
    %319 = vmatpush1.msra.mxu0 %v282
    %320 = vmatprep.subr.mxu0 %v288
    %321 = vmatpush1.msra.mxu0 %v286
    %322 = vmatprep.subr.mxu0 %v292
    %323 = vmatpush1.msra.mxu0 %v290
    %324 = vmatprep.subr.mxu0 %v296
    %325 = vmatpush1.msra.mxu0 %v294
    %326 = vmatprep.subr.mxu0 %v300
    %327 = vmatpush1.msra.mxu0 %v298
    %328 = vmatprep.subr.mxu0 %v304
    %329 = vmatpush1.msra.mxu0 %v302
    %330 = vmatprep.subr.mxu0 %v308
    %331 = vmatpush1.msra.mxu0 %v306
    %332 = vmatprep.subr.mxu0 %v312
    %333 = vmatpush1.msra.mxu0 %v310
    %334 = vmatprep.subr.mxu0 0.0
    %335 = vmatpush1.msra.mxu0 0.0
    %336 = vmatprep.subr.mxu0 0.0
    %337 = vmatpush1.msra.mxu0 0.0
    %338 = vmatprep.subr.mxu0 0.0
    %339 = vmatpush1.msra.mxu0 0.0
    %340 = vmatprep.subr.mxu0 0.0
    %341 = vmatpush1.msra.mxu0 0.0
    %342 = vmatprep.subr.mxu0 0.0
    %343 = vmatpush1.msra.mxu0 0.0
    %344 = vmatprep.subr.mxu0 0.0
    %345 = vmatpush1.msra.mxu0 0.0
    %346 = vmatprep.subr.mxu0 0.0
    %347 = vmatpush1.msra.mxu0 0.0
    %348 = vmatprep.subr.mxu0 0.0
    %349 = vmatpush1.msra.mxu0 0.0
    %350 = vmatprep.subr.mxu0 0.0
    %351 = vmatpush1.msra.mxu0 0.0
    %352 = vmatprep.subr.mxu0 0.0
    %353 = vmatpush1.msra.mxu0 0.0
    %354 = vmatprep.subr.mxu0 0.0
    %355 = vmatpush1.msra.mxu0 0.0
    %356 = vmatprep.subr.mxu0 0.0
    %357 = vmatpush1.msra.mxu0 0.0
    %358 = vmatprep.subr.mxu0 0.0
    %359 = vmatpush1.msra.mxu0 0.0
    %360 = vmatprep.subr.mxu0 0.0
    %361 = vmatpush1.msra.mxu0 0.0
    %362 = vmatprep.subr.mxu0 0.0
    %363 = vmatpush1.msra.mxu0 0.0
    %364 = vmatprep.subr.mxu0 0.0
    %365 = vmatpush1.msra.mxu0 0.0
    %366 = vmatprep.subr.mxu0 0.0
    %367 = vmatpush1.msra.mxu0 0.0
    %368 = vmatprep.subr.mxu0 0.0
    %369 = vmatpush1.msra.mxu0 0.0
    %370 = vmatprep.subr.mxu0 0.0
    %371 = vmatpush1.msra.mxu0 0.0
    %372 = vmatprep.subr.mxu0 0.0
    %373 = vmatpush1.msra.mxu0 0.0
    %374 = vmatprep.subr.mxu0 0.0
    %375 = vmatpush1.msra.mxu0 0.0
    %376 = vmatprep.subr.mxu0 0.0
    %377 = vmatpush1.msra.mxu0 0.0
    %378 = vmatprep.subr.mxu0 0.0
    %379 = vmatpush1.msra.mxu0 0.0
    %380 = vmatprep.subr.mxu0 0.0
    %381 = vmatpush1.msra.mxu0 0.0
    %382 = vmatprep.mubr.f32.mxu0 0.0
    %383 = vmatmul.mubr.f32.gmra.mrb[0].mxu0 %v316
    %v384 = vpop.f32.mrb[0].mxu0
    %v385 = vadd.f32 0.0, %v384
    %v386 = vpop.f32.mrb[0].mxu0
    %v387 = vadd.f32 0.0, %v386
    %388 = vdwg.mxu0
    %v389 = vmul.f32 %v29, 0.75
    %v390 = vmul.f32 %v30, 0.75
    %v391 = vadd.f32 %v389, %v385
    %v392 = vadd.f32 %v390, %v387
    %v393 = vld [vmem:[%s4] sm:$0xff]
    %395 = vset.pattern.permute.xlu0 0
    %396 = vperm.xlu0 %395, %v393
    %v397 = vpop.permute.xlu0 %396
    %v399 = vadd.f32 %v391, %v397
    %v400 = vadd.f32 %v392, %v397
    %s401 = scalar_lea.vmem %s1, 64
    %v402 = vld [vmem:[%s401] sm:$0xff]
    %v403 = vld [vmem:[%s401 + $0x8] sm:$0xff]
    %v404 = vld [vmem:[%s401 + $0x10] sm:$0xff]
    %v405 = vld [vmem:[%s401 + $0x18] sm:$0xff]
    %v406 = vld [vmem:[%s401 + $0x20] sm:$0xff]
    %v407 = vld [vmem:[%s401 + $0x28] sm:$0xff]
    %v408 = vld [vmem:[%s401 + $0x30] sm:$0xff]
    %v409 = vld [vmem:[%s401 + $0x38] sm:$0xff]
    %411 = vset.pattern.permute.xlu0 0
    %412 = vperm.xlu0 %411, %v402
    %v413 = vpop.permute.xlu0 %412
    %416 = vset.pattern.permute.xlu0 0
    %417 = vperm.xlu0 %416, %v403
    %v418 = vpop.permute.xlu0 %417
    %421 = vset.pattern.permute.xlu0 0
    %422 = vperm.xlu0 %421, %v404
    %v423 = vpop.permute.xlu0 %422
    %426 = vset.pattern.permute.xlu0 0
    %427 = vperm.xlu0 %426, %v405
    %v428 = vpop.permute.xlu0 %427
    %431 = vset.pattern.permute.xlu0 0
    %432 = vperm.xlu0 %431, %v406
    %v433 = vpop.permute.xlu0 %432
    %436 = vset.pattern.permute.xlu0 0
    %437 = vperm.xlu0 %436, %v407
    %v438 = vpop.permute.xlu0 %437
    %441 = vset.pattern.permute.xlu0 0
    %442 = vperm.xlu0 %441, %v408
    %v443 = vpop.permute.xlu0 %442
    %446 = vset.pattern.permute.xlu0 0
    %447 = vperm.xlu0 %446, %v409
    %v448 = vpop.permute.xlu0 %447
    %450 = vmatprep.subr.mxu0 %v400
    %451 = vmatpush1.msra.mxu0 %v399
    %452 = vmatprep.subr.mxu0 0.0
    %453 = vmatpush1.msra.mxu0 0.0
    %454 = vmatprep.subr.mxu0 0.0
    %455 = vmatpush1.msra.mxu0 0.0
    %456 = vmatprep.subr.mxu0 0.0
    %457 = vmatpush1.msra.mxu0 0.0
    %458 = vmatprep.subr.mxu0 0.0
    %459 = vmatpush1.msra.mxu0 0.0
    %460 = vmatprep.subr.mxu0 0.0
    %461 = vmatpush1.msra.mxu0 0.0
    %462 = vmatprep.subr.mxu0 0.0
    %463 = vmatpush1.msra.mxu0 0.0
    %464 = vmatprep.subr.mxu0 0.0
    %465 = vmatpush1.msra.mxu0 0.0
    %466 = vmatprep.subr.mxu0 0.0
    %467 = vmatpush1.msra.mxu0 0.0
    %468 = vmatprep.subr.mxu0 0.0
    %469 = vmatpush1.msra.mxu0 0.0
    %470 = vmatprep.subr.mxu0 0.0
    %471 = vmatpush1.msra.mxu0 0.0
    %472 = vmatprep.subr.mxu0 0.0
    %473 = vmatpush1.msra.mxu0 0.0
    %474 = vmatprep.subr.mxu0 0.0
    %475 = vmatpush1.msra.mxu0 0.0
    %476 = vmatprep.subr.mxu0 0.0
    %477 = vmatpush1.msra.mxu0 0.0
    %478 = vmatprep.subr.mxu0 0.0
    %479 = vmatpush1.msra.mxu0 0.0
    %480 = vmatprep.subr.mxu0 0.0
    %481 = vmatpush1.msra.mxu0 0.0
    %482 = vmatprep.subr.mxu0 0.0
    %483 = vmatpush1.msra.mxu0 0.0
    %484 = vmatprep.subr.mxu0 0.0
    %485 = vmatpush1.msra.mxu0 0.0
    %486 = vmatprep.subr.mxu0 0.0
    %487 = vmatpush1.msra.mxu0 0.0
    %488 = vmatprep.subr.mxu0 0.0
    %489 = vmatpush1.msra.mxu0 0.0
    %490 = vmatprep.subr.mxu0 0.0
    %491 = vmatpush1.msra.mxu0 0.0
    %492 = vmatprep.subr.mxu0 0.0
    %493 = vmatpush1.msra.mxu0 0.0
    %494 = vmatprep.subr.mxu0 0.0
    %495 = vmatpush1.msra.mxu0 0.0
    %496 = vmatprep.subr.mxu0 0.0
    %497 = vmatpush1.msra.mxu0 0.0
    %498 = vmatprep.subr.mxu0 0.0
    %499 = vmatpush1.msra.mxu0 0.0
    %500 = vmatprep.subr.mxu0 0.0
    %501 = vmatpush1.msra.mxu0 0.0
    %502 = vmatprep.subr.mxu0 0.0
    %503 = vmatpush1.msra.mxu0 0.0
    %504 = vmatprep.subr.mxu0 0.0
    %505 = vmatpush1.msra.mxu0 0.0
    %506 = vmatprep.subr.mxu0 0.0
    %507 = vmatpush1.msra.mxu0 0.0
    %508 = vmatprep.subr.mxu0 0.0
    %509 = vmatpush1.msra.mxu0 0.0
    %510 = vmatprep.subr.mxu0 0.0
    %511 = vmatpush1.msra.mxu0 0.0
    %512 = vmatprep.subr.mxu0 0.0
    %513 = vmatpush1.msra.mxu0 0.0
    %514 = vmatprep.mubr.f32.mxu0 0.0
    %515 = vmatmul.mubr.f32.gmra.mrb[0].mxu0 %v81
    %v516 = vpop.f32.mrb[0].mxu0
    %v517 = vadd.f32 %v413, %v516
    %v518 = vpop.f32.mrb[0].mxu0
    %v519 = vadd.f32 %v413, %v518
    %520 = vmatprep.mubr.f32.mxu0 0.0
    %521 = vmatmul.mubr.f32.gmra.mrb[0].mxu0 %v84
    %v522 = vpop.f32.mrb[0].mxu0
    %v523 = vadd.f32 %v418, %v522
    %v524 = vpop.f32.mrb[0].mxu0
    %v525 = vadd.f32 %v418, %v524
    %526 = vmatprep.mubr.f32.mxu0 0.0
    %527 = vmatmul.mubr.f32.gmra.mrb[0].mxu0 %v87
    %v528 = vpop.f32.mrb[0].mxu0
    %v529 = vadd.f32 %v423, %v528
    %v530 = vpop.f32.mrb[0].mxu0
    %v531 = vadd.f32 %v423, %v530
    %532 = vmatprep.mubr.f32.mxu0 0.0
    %533 = vmatmul.mubr.f32.gmra.mrb[0].mxu0 %v90
    %v534 = vpop.f32.mrb[0].mxu0
    %v535 = vadd.f32 %v428, %v534
    %v536 = vpop.f32.mrb[0].mxu0
    %v537 = vadd.f32 %v428, %v536
    %538 = vmatprep.mubr.f32.mxu0 0.0
    %539 = vmatmul.mubr.f32.gmra.mrb[0].mxu0 %v93
    %v540 = vpop.f32.mrb[0].mxu0
    %v541 = vadd.f32 %v433, %v540
    %v542 = vpop.f32.mrb[0].mxu0
    %v543 = vadd.f32 %v433, %v542
    %544 = vmatprep.mubr.f32.mxu0 0.0
    %545 = vmatmul.mubr.f32.gmra.mrb[0].mxu0 %v96
    %v546 = vpop.f32.mrb[0].mxu0
    %v547 = vadd.f32 %v438, %v546
    %v548 = vpop.f32.mrb[0].mxu0
    %v549 = vadd.f32 %v438, %v548
    %550 = vmatprep.mubr.f32.mxu0 0.0
    %551 = vmatmul.mubr.f32.gmra.mrb[0].mxu0 %v99
    %v552 = vpop.f32.mrb[0].mxu0
    %v553 = vadd.f32 %v443, %v552
    %v554 = vpop.f32.mrb[0].mxu0
    %v555 = vadd.f32 %v443, %v554
    %556 = vmatprep.mubr.f32.mxu0 0.0
    %557 = vmatmul.mubr.f32.gmra.mrb[0].mxu0 %v102
    %v558 = vpop.f32.mrb[0].mxu0
    %v559 = vadd.f32 %v448, %v558
    %v560 = vpop.f32.mrb[0].mxu0
    %v561 = vadd.f32 %v448, %v560
    %562 = vdwg.mxu0
    %v563 = vsub.f32 0.0, %v517
    %v564 = vsub.f32 0.0, %v519
    %v565 = vsub.f32 0.0, %v523
    %v566 = vsub.f32 0.0, %v525
    %v567 = vsub.f32 0.0, %v529
    %v568 = vsub.f32 0.0, %v531
    %v569 = vsub.f32 0.0, %v535
    %v570 = vsub.f32 0.0, %v537
    %v571 = vsub.f32 0.0, %v541
    %v572 = vsub.f32 0.0, %v543
    %v573 = vsub.f32 0.0, %v547
    %v574 = vsub.f32 0.0, %v549
    %v575 = vsub.f32 0.0, %v553
    %v576 = vsub.f32 0.0, %v555
    %v577 = vsub.f32 0.0, %v559
    %v578 = vsub.f32 0.0, %v561
    %v579 = vmul.f32 %v563, 1.442695
    %v580 = vpow.pop %v579
    %v581 = vmul.f32 %v564, 1.442695
    %v582 = vpow.pop %v581
    %v583 = vmul.f32 %v565, 1.442695
    %v584 = vpow.pop %v583
    %v585 = vmul.f32 %v566, 1.442695
    %v586 = vpow.pop %v585
    %v587 = vmul.f32 %v567, 1.442695
    %v588 = vpow.pop %v587
    %v589 = vmul.f32 %v568, 1.442695
    %v590 = vpow.pop %v589
    %v591 = vmul.f32 %v569, 1.442695
    %v592 = vpow.pop %v591
    %v593 = vmul.f32 %v570, 1.442695
    %v594 = vpow.pop %v593
    %v595 = vmul.f32 %v571, 1.442695
    %v596 = vpow.pop %v595
    %v597 = vmul.f32 %v572, 1.442695
    %v598 = vpow.pop %v597
    %v599 = vmul.f32 %v573, 1.442695
    %v600 = vpow.pop %v599
    %v601 = vmul.f32 %v574, 1.442695
    %v602 = vpow.pop %v601
    %v603 = vmul.f32 %v575, 1.442695
    %v604 = vpow.pop %v603
    %v605 = vmul.f32 %v576, 1.442695
    %v606 = vpow.pop %v605
    %v607 = vmul.f32 %v577, 1.442695
    %v608 = vpow.pop %v607
    %v609 = vmul.f32 %v578, 1.442695
    %v610 = vpow.pop %v609
    %v611 = vadd.f32 %v580, 1.0
    %v612 = vadd.f32 %v582, 1.0
    %v613 = vadd.f32 %v584, 1.0
    %v614 = vadd.f32 %v586, 1.0
    %v615 = vadd.f32 %v588, 1.0
    %v616 = vadd.f32 %v590, 1.0
    %v617 = vadd.f32 %v592, 1.0
    %v618 = vadd.f32 %v594, 1.0
    %v619 = vadd.f32 %v596, 1.0
    %v620 = vadd.f32 %v598, 1.0
    %v621 = vadd.f32 %v600, 1.0
    %v622 = vadd.f32 %v602, 1.0
    %v623 = vadd.f32 %v604, 1.0
    %v624 = vadd.f32 %v606, 1.0
    %v625 = vadd.f32 %v608, 1.0
    %v626 = vadd.f32 %v610, 1.0
    %v627 = vrcp.pop %v611
    %v628 = vmul.f32 %v517, %v627
    %v629 = vrcp.pop %v612
    %v630 = vmul.f32 %v519, %v629
    %v631 = vrcp.pop %v613
    %v632 = vmul.f32 %v523, %v631
    %v633 = vrcp.pop %v614
    %v634 = vmul.f32 %v525, %v633
    %v635 = vrcp.pop %v615
    %v636 = vmul.f32 %v529, %v635
    %v637 = vrcp.pop %v616
    %v638 = vmul.f32 %v531, %v637
    %v639 = vrcp.pop %v617
    %v640 = vmul.f32 %v535, %v639
    %v641 = vrcp.pop %v618
    %v642 = vmul.f32 %v537, %v641
    %v643 = vrcp.pop %v619
    %v644 = vmul.f32 %v541, %v643
    %v645 = vrcp.pop %v620
    %v646 = vmul.f32 %v543, %v645
    %v647 = vrcp.pop %v621
    %v648 = vmul.f32 %v547, %v647
    %v649 = vrcp.pop %v622
    %v650 = vmul.f32 %v549, %v649
    %v651 = vrcp.pop %v623
    %v652 = vmul.f32 %v553, %v651
    %v653 = vrcp.pop %v624
    %v654 = vmul.f32 %v555, %v653
    %v655 = vrcp.pop %v625
    %v656 = vmul.f32 %v559, %v655
    %v657 = vrcp.pop %v626
    %v658 = vmul.f32 %v561, %v657
    %s659 = scalar_lea.vmem %s3, 8
    %v660 = vld [vmem:[%s659] sm:$0xff]
    %v662 = vsel %vm314, %v660, 0
    %664 = vmatprep.subr.mxu0 %v630
    %665 = vmatpush1.msra.mxu0 %v628
    %666 = vmatprep.subr.mxu0 %v634
    %667 = vmatpush1.msra.mxu0 %v632
    %668 = vmatprep.subr.mxu0 %v638
    %669 = vmatpush1.msra.mxu0 %v636
    %670 = vmatprep.subr.mxu0 %v642
    %671 = vmatpush1.msra.mxu0 %v640
    %672 = vmatprep.subr.mxu0 %v646
    %673 = vmatpush1.msra.mxu0 %v644
    %674 = vmatprep.subr.mxu0 %v650
    %675 = vmatpush1.msra.mxu0 %v648
    %676 = vmatprep.subr.mxu0 %v654
    %677 = vmatpush1.msra.mxu0 %v652
    %678 = vmatprep.subr.mxu0 %v658
    %679 = vmatpush1.msra.mxu0 %v656
    %680 = vmatprep.subr.mxu0 0.0
    %681 = vmatpush1.msra.mxu0 0.0
    %682 = vmatprep.subr.mxu0 0.0
    %683 = vmatpush1.msra.mxu0 0.0
    %684 = vmatprep.subr.mxu0 0.0
    %685 = vmatpush1.msra.mxu0 0.0
    %686 = vmatprep.subr.mxu0 0.0
    %687 = vmatpush1.msra.mxu0 0.0
    %688 = vmatprep.subr.mxu0 0.0
    %689 = vmatpush1.msra.mxu0 0.0
    %690 = vmatprep.subr.mxu0 0.0
    %691 = vmatpush1.msra.mxu0 0.0
    %692 = vmatprep.subr.mxu0 0.0
    %693 = vmatpush1.msra.mxu0 0.0
    %694 = vmatprep.subr.mxu0 0.0
    %695 = vmatpush1.msra.mxu0 0.0
    %696 = vmatprep.subr.mxu0 0.0
    %697 = vmatpush1.msra.mxu0 0.0
    %698 = vmatprep.subr.mxu0 0.0
    %699 = vmatpush1.msra.mxu0 0.0
    %700 = vmatprep.subr.mxu0 0.0
    %701 = vmatpush1.msra.mxu0 0.0
    %702 = vmatprep.subr.mxu0 0.0
    %703 = vmatpush1.msra.mxu0 0.0
    %704 = vmatprep.subr.mxu0 0.0
    %705 = vmatpush1.msra.mxu0 0.0
    %706 = vmatprep.subr.mxu0 0.0
    %707 = vmatpush1.msra.mxu0 0.0
    %708 = vmatprep.subr.mxu0 0.0
    %709 = vmatpush1.msra.mxu0 0.0
    %710 = vmatprep.subr.mxu0 0.0
    %711 = vmatpush1.msra.mxu0 0.0
    %712 = vmatprep.subr.mxu0 0.0
    %713 = vmatpush1.msra.mxu0 0.0
    %714 = vmatprep.subr.mxu0 0.0
    %715 = vmatpush1.msra.mxu0 0.0
    %716 = vmatprep.subr.mxu0 0.0
    %717 = vmatpush1.msra.mxu0 0.0
    %718 = vmatprep.subr.mxu0 0.0
    %719 = vmatpush1.msra.mxu0 0.0
    %720 = vmatprep.subr.mxu0 0.0
    %721 = vmatpush1.msra.mxu0 0.0
    %722 = vmatprep.subr.mxu0 0.0
    %723 = vmatpush1.msra.mxu0 0.0
    %724 = vmatprep.subr.mxu0 0.0
    %725 = vmatpush1.msra.mxu0 0.0
    %726 = vmatprep.subr.mxu0 0.0
    %727 = vmatpush1.msra.mxu0 0.0
    %728 = vmatprep.mubr.f32.mxu0 0.0
    %729 = vmatmul.mubr.f32.gmra.mrb[0].mxu0 %v662
    %v730 = vpop.f32.mrb[0].mxu0
    %v731 = vadd.f32 0.0, %v730
    %v732 = vpop.f32.mrb[0].mxu0
    %v733 = vadd.f32 0.0, %v732
    %734 = vdwg.mxu0
    %v735 = vmul.f32 %v399, 0.6666667
    %v736 = vmul.f32 %v400, 0.6666667
    %v737 = vadd.f32 %v735, %v731
    %v738 = vadd.f32 %v736, %v733
    %s739 = scalar_lea.vmem %s4, 8
    %v740 = vld [vmem:[%s739] sm:$0xff]
    %742 = vset.pattern.permute.xlu0 0
    %743 = vperm.xlu0 %742, %v740
    %v744 = vpop.permute.xlu0 %743
    %v746 = vadd.f32 %v737, %v744
    %v747 = vadd.f32 %v738, %v744
    %s748 = scalar_lea.vmem %s1, 128
    %v749 = vld [vmem:[%s748] sm:$0xff]
    %v750 = vld [vmem:[%s748 + $0x8] sm:$0xff]
    %v751 = vld [vmem:[%s748 + $0x10] sm:$0xff]
    %v752 = vld [vmem:[%s748 + $0x18] sm:$0xff]
    %v753 = vld [vmem:[%s748 + $0x20] sm:$0xff]
    %v754 = vld [vmem:[%s748 + $0x28] sm:$0xff]
    %v755 = vld [vmem:[%s748 + $0x30] sm:$0xff]
    %v756 = vld [vmem:[%s748 + $0x38] sm:$0xff]
    %758 = vset.pattern.permute.xlu0 0
    %759 = vperm.xlu0 %758, %v749
    %v760 = vpop.permute.xlu0 %759
    %763 = vset.pattern.permute.xlu0 0
    %764 = vperm.xlu0 %763, %v750
    %v765 = vpop.permute.xlu0 %764
    %768 = vset.pattern.permute.xlu0 0
    %769 = vperm.xlu0 %768, %v751
    %v770 = vpop.permute.xlu0 %769
    %773 = vset.pattern.permute.xlu0 0
    %774 = vperm.xlu0 %773, %v752
    %v775 = vpop.permute.xlu0 %774
    %778 = vset.pattern.permute.xlu0 0
    %779 = vperm.xlu0 %778, %v753
    %v780 = vpop.permute.xlu0 %779
    %783 = vset.pattern.permute.xlu0 0
    %784 = vperm.xlu0 %783, %v754
    %v785 = vpop.permute.xlu0 %784
    %788 = vset.pattern.permute.xlu0 0
    %789 = vperm.xlu0 %788, %v755
    %v790 = vpop.permute.xlu0 %789
    %793 = vset.pattern.permute.xlu0 0
    %794 = vperm.xlu0 %793, %v756
    %v795 = vpop.permute.xlu0 %794
    %797 = vmatprep.subr.mxu0 %v747
    %798 = vmatpush1.msra.mxu0 %v746
    %799 = vmatprep.subr.mxu0 0.0
    %800 = vmatpush1.msra.mxu0 0.0
    %801 = vmatprep.subr.mxu0 0.0
    %802 = vmatpush1.msra.mxu0 0.0
    %803 = vmatprep.subr.mxu0 0.0
    %804 = vmatpush1.msra.mxu0 0.0
    %805 = vmatprep.subr.mxu0 0.0
    %806 = vmatpush1.msra.mxu0 0.0
    %807 = vmatprep.subr.mxu0 0.0
    %808 = vmatpush1.msra.mxu0 0.0
    %809 = vmatprep.subr.mxu0 0.0
    %810 = vmatpush1.msra.mxu0 0.0
    %811 = vmatprep.subr.mxu0 0.0
    %812 = vmatpush1.msra.mxu0 0.0
    %813 = vmatprep.subr.mxu0 0.0
    %814 = vmatpush1.msra.mxu0 0.0
    %815 = vmatprep.subr.mxu0 0.0
    %816 = vmatpush1.msra.mxu0 0.0
    %817 = vmatprep.subr.mxu0 0.0
    %818 = vmatpush1.msra.mxu0 0.0
    %819 = vmatprep.subr.mxu0 0.0
    %820 = vmatpush1.msra.mxu0 0.0
    %821 = vmatprep.subr.mxu0 0.0
    %822 = vmatpush1.msra.mxu0 0.0
    %823 = vmatprep.subr.mxu0 0.0
    %824 = vmatpush1.msra.mxu0 0.0
    %825 = vmatprep.subr.mxu0 0.0
    %826 = vmatpush1.msra.mxu0 0.0
    %827 = vmatprep.subr.mxu0 0.0
    %828 = vmatpush1.msra.mxu0 0.0
    %829 = vmatprep.subr.mxu0 0.0
    %830 = vmatpush1.msra.mxu0 0.0
    %831 = vmatprep.subr.mxu0 0.0
    %832 = vmatpush1.msra.mxu0 0.0
    %833 = vmatprep.subr.mxu0 0.0
    %834 = vmatpush1.msra.mxu0 0.0
    %835 = vmatprep.subr.mxu0 0.0
    %836 = vmatpush1.msra.mxu0 0.0
    %837 = vmatprep.subr.mxu0 0.0
    %838 = vmatpush1.msra.mxu0 0.0
    %839 = vmatprep.subr.mxu0 0.0
    %840 = vmatpush1.msra.mxu0 0.0
    %841 = vmatprep.subr.mxu0 0.0
    %842 = vmatpush1.msra.mxu0 0.0
    %843 = vmatprep.subr.mxu0 0.0
    %844 = vmatpush1.msra.mxu0 0.0
    %845 = vmatprep.subr.mxu0 0.0
    %846 = vmatpush1.msra.mxu0 0.0
    %847 = vmatprep.subr.mxu0 0.0
    %848 = vmatpush1.msra.mxu0 0.0
    %849 = vmatprep.subr.mxu0 0.0
    %850 = vmatpush1.msra.mxu0 0.0
    %851 = vmatprep.subr.mxu0 0.0
    %852 = vmatpush1.msra.mxu0 0.0
    %853 = vmatprep.subr.mxu0 0.0
    %854 = vmatpush1.msra.mxu0 0.0
    %855 = vmatprep.subr.mxu0 0.0
    %856 = vmatpush1.msra.mxu0 0.0
    %857 = vmatprep.subr.mxu0 0.0
    %858 = vmatpush1.msra.mxu0 0.0
    %859 = vmatprep.subr.mxu0 0.0
    %860 = vmatpush1.msra.mxu0 0.0
    %861 = vmatprep.mubr.f32.mxu0 0.0
    %862 = vmatmul.mubr.f32.gmra.mrb[0].mxu0 %v81
    %v863 = vpop.f32.mrb[0].mxu0
    %v864 = vadd.f32 %v760, %v863
    %v865 = vpop.f32.mrb[0].mxu0
    %v866 = vadd.f32 %v760, %v865
    %867 = vmatprep.mubr.f32.mxu0 0.0
    %868 = vmatmul.mubr.f32.gmra.mrb[0].mxu0 %v84
    %v869 = vpop.f32.mrb[0].mxu0
    %v870 = vadd.f32 %v765, %v869
    %v871 = vpop.f32.mrb[0].mxu0
    %v872 = vadd.f32 %v765, %v871
    %873 = vmatprep.mubr.f32.mxu0 0.0
    %874 = vmatmul.mubr.f32.gmra.mrb[0].mxu0 %v87
    %v875 = vpop.f32.mrb[0].mxu0
    %v876 = vadd.f32 %v770, %v875
    %v877 = vpop.f32.mrb[0].mxu0
    %v878 = vadd.f32 %v770, %v877
    %879 = vmatprep.mubr.f32.mxu0 0.0
    %880 = vmatmul.mubr.f32.gmra.mrb[0].mxu0 %v90
    %v881 = vpop.f32.mrb[0].mxu0
    %v882 = vadd.f32 %v775, %v881
    %v883 = vpop.f32.mrb[0].mxu0
    %v884 = vadd.f32 %v775, %v883
    %885 = vmatprep.mubr.f32.mxu0 0.0
    %886 = vmatmul.mubr.f32.gmra.mrb[0].mxu0 %v93
    %v887 = vpop.f32.mrb[0].mxu0
    %v888 = vadd.f32 %v780, %v887
    %v889 = vpop.f32.mrb[0].mxu0
    %v890 = vadd.f32 %v780, %v889
    %891 = vmatprep.mubr.f32.mxu0 0.0
    %892 = vmatmul.mubr.f32.gmra.mrb[0].mxu0 %v96
    %v893 = vpop.f32.mrb[0].mxu0
    %v894 = vadd.f32 %v785, %v893
    %v895 = vpop.f32.mrb[0].mxu0
    %v896 = vadd.f32 %v785, %v895
    %897 = vmatprep.mubr.f32.mxu0 0.0
    %898 = vmatmul.mubr.f32.gmra.mrb[0].mxu0 %v99
    %v899 = vpop.f32.mrb[0].mxu0
    %v900 = vadd.f32 %v790, %v899
    %v901 = vpop.f32.mrb[0].mxu0
    %v902 = vadd.f32 %v790, %v901
    %903 = vmatprep.mubr.f32.mxu0 0.0
    %904 = vmatmul.mubr.f32.gmra.mrb[0].mxu0 %v102
    %v905 = vpop.f32.mrb[0].mxu0
    %v906 = vadd.f32 %v795, %v905
    %v907 = vpop.f32.mrb[0].mxu0
    %v908 = vadd.f32 %v795, %v907
    %909 = vdwg.mxu0
    %v910 = vsub.f32 0.0, %v864
    %v911 = vsub.f32 0.0, %v866
    %v912 = vsub.f32 0.0, %v870
    %v913 = vsub.f32 0.0, %v872
    %v914 = vsub.f32 0.0, %v876
    %v915 = vsub.f32 0.0, %v878
    %v916 = vsub.f32 0.0, %v882
    %v917 = vsub.f32 0.0, %v884
    %v918 = vsub.f32 0.0, %v888
    %v919 = vsub.f32 0.0, %v890
    %v920 = vsub.f32 0.0, %v894
    %v921 = vsub.f32 0.0, %v896
    %v922 = vsub.f32 0.0, %v900
    %v923 = vsub.f32 0.0, %v902
    %v924 = vsub.f32 0.0, %v906
    %v925 = vsub.f32 0.0, %v908
    %v926 = vmul.f32 %v910, 1.442695
    %v927 = vpow.pop %v926
    %v928 = vmul.f32 %v911, 1.442695
    %v929 = vpow.pop %v928
    %v930 = vmul.f32 %v912, 1.442695
    %v931 = vpow.pop %v930
    %v932 = vmul.f32 %v913, 1.442695
    %v933 = vpow.pop %v932
    %v934 = vmul.f32 %v914, 1.442695
    %v935 = vpow.pop %v934
    %v936 = vmul.f32 %v915, 1.442695
    %v937 = vpow.pop %v936
    %v938 = vmul.f32 %v916, 1.442695
    %v939 = vpow.pop %v938
    %v940 = vmul.f32 %v917, 1.442695
    %v941 = vpow.pop %v940
    %v942 = vmul.f32 %v918, 1.442695
    %v943 = vpow.pop %v942
    %v944 = vmul.f32 %v919, 1.442695
    %v945 = vpow.pop %v944
    %v946 = vmul.f32 %v920, 1.442695
    %v947 = vpow.pop %v946
    %v948 = vmul.f32 %v921, 1.442695
    %v949 = vpow.pop %v948
    %v950 = vmul.f32 %v922, 1.442695
    %v951 = vpow.pop %v950
    %v952 = vmul.f32 %v923, 1.442695
    %v953 = vpow.pop %v952
    %v954 = vmul.f32 %v924, 1.442695
    %v955 = vpow.pop %v954
    %v956 = vmul.f32 %v925, 1.442695
    %v957 = vpow.pop %v956
    %v958 = vadd.f32 %v927, 1.0
    %v959 = vadd.f32 %v929, 1.0
    %v960 = vadd.f32 %v931, 1.0
    %v961 = vadd.f32 %v933, 1.0
    %v962 = vadd.f32 %v935, 1.0
    %v963 = vadd.f32 %v937, 1.0
    %v964 = vadd.f32 %v939, 1.0
    %v965 = vadd.f32 %v941, 1.0
    %v966 = vadd.f32 %v943, 1.0
    %v967 = vadd.f32 %v945, 1.0
    %v968 = vadd.f32 %v947, 1.0
    %v969 = vadd.f32 %v949, 1.0
    %v970 = vadd.f32 %v951, 1.0
    %v971 = vadd.f32 %v953, 1.0
    %v972 = vadd.f32 %v955, 1.0
    %v973 = vadd.f32 %v957, 1.0
    %v974 = vrcp.pop %v958
    %v975 = vmul.f32 %v864, %v974
    %v976 = vrcp.pop %v959
    %v977 = vmul.f32 %v866, %v976
    %v978 = vrcp.pop %v960
    %v979 = vmul.f32 %v870, %v978
    %v980 = vrcp.pop %v961
    %v981 = vmul.f32 %v872, %v980
    %v982 = vrcp.pop %v962
    %v983 = vmul.f32 %v876, %v982
    %v984 = vrcp.pop %v963
    %v985 = vmul.f32 %v878, %v984
    %v986 = vrcp.pop %v964
    %v987 = vmul.f32 %v882, %v986
    %v988 = vrcp.pop %v965
    %v989 = vmul.f32 %v884, %v988
    %v990 = vrcp.pop %v966
    %v991 = vmul.f32 %v888, %v990
    %v992 = vrcp.pop %v967
    %v993 = vmul.f32 %v890, %v992
    %v994 = vrcp.pop %v968
    %v995 = vmul.f32 %v894, %v994
    %v996 = vrcp.pop %v969
    %v997 = vmul.f32 %v896, %v996
    %v998 = vrcp.pop %v970
    %v999 = vmul.f32 %v900, %v998
    %v1000 = vrcp.pop %v971
    %v1001 = vmul.f32 %v902, %v1000
    %v1002 = vrcp.pop %v972
    %v1003 = vmul.f32 %v906, %v1002
    %v1004 = vrcp.pop %v973
    %v1005 = vmul.f32 %v908, %v1004
    %s1006 = scalar_lea.vmem %s3, 16
    %v1007 = vld [vmem:[%s1006] sm:$0xff]
    %v1009 = vsel %vm314, %v1007, 0
    %1011 = vmatprep.subr.mxu0 %v977
    %1012 = vmatpush1.msra.mxu0 %v975
    %1013 = vmatprep.subr.mxu0 %v981
    %1014 = vmatpush1.msra.mxu0 %v979
    %1015 = vmatprep.subr.mxu0 %v985
    %1016 = vmatpush1.msra.mxu0 %v983
    %1017 = vmatprep.subr.mxu0 %v989
    %1018 = vmatpush1.msra.mxu0 %v987
    %1019 = vmatprep.subr.mxu0 %v993
    %1020 = vmatpush1.msra.mxu0 %v991
    %1021 = vmatprep.subr.mxu0 %v997
    %1022 = vmatpush1.msra.mxu0 %v995
    %1023 = vmatprep.subr.mxu0 %v1001
    %1024 = vmatpush1.msra.mxu0 %v999
    %1025 = vmatprep.subr.mxu0 %v1005
    %1026 = vmatpush1.msra.mxu0 %v1003
    %1027 = vmatprep.subr.mxu0 0.0
    %1028 = vmatpush1.msra.mxu0 0.0
    %1029 = vmatprep.subr.mxu0 0.0
    %1030 = vmatpush1.msra.mxu0 0.0
    %1031 = vmatprep.subr.mxu0 0.0
    %1032 = vmatpush1.msra.mxu0 0.0
    %1033 = vmatprep.subr.mxu0 0.0
    %1034 = vmatpush1.msra.mxu0 0.0
    %1035 = vmatprep.subr.mxu0 0.0
    %1036 = vmatpush1.msra.mxu0 0.0
    %1037 = vmatprep.subr.mxu0 0.0
    %1038 = vmatpush1.msra.mxu0 0.0
    %1039 = vmatprep.subr.mxu0 0.0
    %1040 = vmatpush1.msra.mxu0 0.0
    %1041 = vmatprep.subr.mxu0 0.0
    %1042 = vmatpush1.msra.mxu0 0.0
    %1043 = vmatprep.subr.mxu0 0.0
    %1044 = vmatpush1.msra.mxu0 0.0
    %1045 = vmatprep.subr.mxu0 0.0
    %1046 = vmatpush1.msra.mxu0 0.0
    %1047 = vmatprep.subr.mxu0 0.0
    %1048 = vmatpush1.msra.mxu0 0.0
    %1049 = vmatprep.subr.mxu0 0.0
    %1050 = vmatpush1.msra.mxu0 0.0
    %1051 = vmatprep.subr.mxu0 0.0
    %1052 = vmatpush1.msra.mxu0 0.0
    %1053 = vmatprep.subr.mxu0 0.0
    %1054 = vmatpush1.msra.mxu0 0.0
    %1055 = vmatprep.subr.mxu0 0.0
    %1056 = vmatpush1.msra.mxu0 0.0
    %1057 = vmatprep.subr.mxu0 0.0
    %1058 = vmatpush1.msra.mxu0 0.0
    %1059 = vmatprep.subr.mxu0 0.0
    %1060 = vmatpush1.msra.mxu0 0.0
    %1061 = vmatprep.subr.mxu0 0.0
    %1062 = vmatpush1.msra.mxu0 0.0
    %1063 = vmatprep.subr.mxu0 0.0
    %1064 = vmatpush1.msra.mxu0 0.0
    %1065 = vmatprep.subr.mxu0 0.0
    %1066 = vmatpush1.msra.mxu0 0.0
    %1067 = vmatprep.subr.mxu0 0.0
    %1068 = vmatpush1.msra.mxu0 0.0
    %1069 = vmatprep.subr.mxu0 0.0
    %1070 = vmatpush1.msra.mxu0 0.0
    %1071 = vmatprep.subr.mxu0 0.0
    %1072 = vmatpush1.msra.mxu0 0.0
    %1073 = vmatprep.subr.mxu0 0.0
    %1074 = vmatpush1.msra.mxu0 0.0
    %1075 = vmatprep.mubr.f32.mxu0 0.0
    %1076 = vmatmul.mubr.f32.gmra.mrb[0].mxu0 %v1009
    %v1077 = vpop.f32.mrb[0].mxu0
    %v1078 = vadd.f32 0.0, %v1077
    %v1079 = vpop.f32.mrb[0].mxu0
    %v1080 = vadd.f32 0.0, %v1079
    %1081 = vdwg.mxu0
    %v1082 = vmul.f32 %v746, 0.5
    %v1083 = vmul.f32 %v747, 0.5
    %v1084 = vadd.f32 %v1082, %v1078
    %v1085 = vadd.f32 %v1083, %v1080
    %s1086 = scalar_lea.vmem %s4, 16
    %v1087 = vld [vmem:[%s1086] sm:$0xff]
    %1089 = vset.pattern.permute.xlu0 0
    %1090 = vperm.xlu0 %1089, %v1087
    %v1091 = vpop.permute.xlu0 %1090
    %v1093 = vadd.f32 %v1084, %v1091
    %v1094 = vadd.f32 %v1085, %v1091
    %s1095 = scalar_lea.vmem %s1, 192
    %v1096 = vld [vmem:[%s1095] sm:$0xff]
    %v1097 = vld [vmem:[%s1095 + $0x8] sm:$0xff]
    %v1098 = vld [vmem:[%s1095 + $0x10] sm:$0xff]
    %v1099 = vld [vmem:[%s1095 + $0x18] sm:$0xff]
    %v1100 = vld [vmem:[%s1095 + $0x20] sm:$0xff]
    %v1101 = vld [vmem:[%s1095 + $0x28] sm:$0xff]
    %v1102 = vld [vmem:[%s1095 + $0x30] sm:$0xff]
    %v1103 = vld [vmem:[%s1095 + $0x38] sm:$0xff]
    %1105 = vset.pattern.permute.xlu0 0
    %1106 = vperm.xlu0 %1105, %v1096
    %v1107 = vpop.permute.xlu0 %1106
    %1110 = vset.pattern.permute.xlu0 0
    %1111 = vperm.xlu0 %1110, %v1097
    %v1112 = vpop.permute.xlu0 %1111
    %1115 = vset.pattern.permute.xlu0 0
    %1116 = vperm.xlu0 %1115, %v1098
    %v1117 = vpop.permute.xlu0 %1116
    %1120 = vset.pattern.permute.xlu0 0
    %1121 = vperm.xlu0 %1120, %v1099
    %v1122 = vpop.permute.xlu0 %1121
    %1125 = vset.pattern.permute.xlu0 0
    %1126 = vperm.xlu0 %1125, %v1100
    %v1127 = vpop.permute.xlu0 %1126
    %1130 = vset.pattern.permute.xlu0 0
    %1131 = vperm.xlu0 %1130, %v1101
    %v1132 = vpop.permute.xlu0 %1131
    %1135 = vset.pattern.permute.xlu0 0
    %1136 = vperm.xlu0 %1135, %v1102
    %v1137 = vpop.permute.xlu0 %1136
    %1140 = vset.pattern.permute.xlu0 0
    %1141 = vperm.xlu0 %1140, %v1103
    %v1142 = vpop.permute.xlu0 %1141
    %1144 = vmatprep.subr.mxu0 %v1094
    %1145 = vmatpush1.msra.mxu0 %v1093
    %1146 = vmatprep.subr.mxu0 0.0
    %1147 = vmatpush1.msra.mxu0 0.0
    %1148 = vmatprep.subr.mxu0 0.0
    %1149 = vmatpush1.msra.mxu0 0.0
    %1150 = vmatprep.subr.mxu0 0.0
    %1151 = vmatpush1.msra.mxu0 0.0
    %1152 = vmatprep.subr.mxu0 0.0
    %1153 = vmatpush1.msra.mxu0 0.0
    %1154 = vmatprep.subr.mxu0 0.0
    %1155 = vmatpush1.msra.mxu0 0.0
    %1156 = vmatprep.subr.mxu0 0.0
    %1157 = vmatpush1.msra.mxu0 0.0
    %1158 = vmatprep.subr.mxu0 0.0
    %1159 = vmatpush1.msra.mxu0 0.0
    %1160 = vmatprep.subr.mxu0 0.0
    %1161 = vmatpush1.msra.mxu0 0.0
    %1162 = vmatprep.subr.mxu0 0.0
    %1163 = vmatpush1.msra.mxu0 0.0
    %1164 = vmatprep.subr.mxu0 0.0
    %1165 = vmatpush1.msra.mxu0 0.0
    %1166 = vmatprep.subr.mxu0 0.0
    %1167 = vmatpush1.msra.mxu0 0.0
    %1168 = vmatprep.subr.mxu0 0.0
    %1169 = vmatpush1.msra.mxu0 0.0
    %1170 = vmatprep.subr.mxu0 0.0
    %1171 = vmatpush1.msra.mxu0 0.0
    %1172 = vmatprep.subr.mxu0 0.0
    %1173 = vmatpush1.msra.mxu0 0.0
    %1174 = vmatprep.subr.mxu0 0.0
    %1175 = vmatpush1.msra.mxu0 0.0
    %1176 = vmatprep.subr.mxu0 0.0
    %1177 = vmatpush1.msra.mxu0 0.0
    %1178 = vmatprep.subr.mxu0 0.0
    %1179 = vmatpush1.msra.mxu0 0.0
    %1180 = vmatprep.subr.mxu0 0.0
    %1181 = vmatpush1.msra.mxu0 0.0
    %1182 = vmatprep.subr.mxu0 0.0
    %1183 = vmatpush1.msra.mxu0 0.0
    %1184 = vmatprep.subr.mxu0 0.0
    %1185 = vmatpush1.msra.mxu0 0.0
    %1186 = vmatprep.subr.mxu0 0.0
    %1187 = vmatpush1.msra.mxu0 0.0
    %1188 = vmatprep.subr.mxu0 0.0
    %1189 = vmatpush1.msra.mxu0 0.0
    %1190 = vmatprep.subr.mxu0 0.0
    %1191 = vmatpush1.msra.mxu0 0.0
    %1192 = vmatprep.subr.mxu0 0.0
    %1193 = vmatpush1.msra.mxu0 0.0
    %1194 = vmatprep.subr.mxu0 0.0
    %1195 = vmatpush1.msra.mxu0 0.0
    %1196 = vmatprep.subr.mxu0 0.0
    %1197 = vmatpush1.msra.mxu0 0.0
    %1198 = vmatprep.subr.mxu0 0.0
    %1199 = vmatpush1.msra.mxu0 0.0
    %1200 = vmatprep.subr.mxu0 0.0
    %1201 = vmatpush1.msra.mxu0 0.0
    %1202 = vmatprep.subr.mxu0 0.0
    %1203 = vmatpush1.msra.mxu0 0.0
    %1204 = vmatprep.subr.mxu0 0.0
    %1205 = vmatpush1.msra.mxu0 0.0
    %1206 = vmatprep.subr.mxu0 0.0
    %1207 = vmatpush1.msra.mxu0 0.0
    %1208 = vmatprep.mubr.f32.mxu0 0.0
    %1209 = vmatmul.mubr.f32.gmra.mrb[0].mxu0 %v81
    %v1210 = vpop.f32.mrb[0].mxu0
    %v1211 = vadd.f32 %v1107, %v1210
    %v1212 = vpop.f32.mrb[0].mxu0
    %v1213 = vadd.f32 %v1107, %v1212
    %1214 = vmatprep.mubr.f32.mxu0 0.0
    %1215 = vmatmul.mubr.f32.gmra.mrb[0].mxu0 %v84
    %v1216 = vpop.f32.mrb[0].mxu0
    %v1217 = vadd.f32 %v1112, %v1216
    %v1218 = vpop.f32.mrb[0].mxu0
    %v1219 = vadd.f32 %v1112, %v1218
    %1220 = vmatprep.mubr.f32.mxu0 0.0
    %1221 = vmatmul.mubr.f32.gmra.mrb[0].mxu0 %v87
    %v1222 = vpop.f32.mrb[0].mxu0
    %v1223 = vadd.f32 %v1117, %v1222
    %v1224 = vpop.f32.mrb[0].mxu0
    %v1225 = vadd.f32 %v1117, %v1224
    %1226 = vmatprep.mubr.f32.mxu0 0.0
    %1227 = vmatmul.mubr.f32.gmra.mrb[0].mxu0 %v90
    %v1228 = vpop.f32.mrb[0].mxu0
    %v1229 = vadd.f32 %v1122, %v1228
    %v1230 = vpop.f32.mrb[0].mxu0
    %v1231 = vadd.f32 %v1122, %v1230
    %1232 = vmatprep.mubr.f32.mxu0 0.0
    %1233 = vmatmul.mubr.f32.gmra.mrb[0].mxu0 %v93
    %v1234 = vpop.f32.mrb[0].mxu0
    %v1235 = vadd.f32 %v1127, %v1234
    %v1236 = vpop.f32.mrb[0].mxu0
    %v1237 = vadd.f32 %v1127, %v1236
    %1238 = vmatprep.mubr.f32.mxu0 0.0
    %1239 = vmatmul.mubr.f32.gmra.mrb[0].mxu0 %v96
    %v1240 = vpop.f32.mrb[0].mxu0
    %v1241 = vadd.f32 %v1132, %v1240
    %v1242 = vpop.f32.mrb[0].mxu0
    %v1243 = vadd.f32 %v1132, %v1242
    %1244 = vmatprep.mubr.f32.mxu0 0.0
    %1245 = vmatmul.mubr.f32.gmra.mrb[0].mxu0 %v99
    %v1246 = vpop.f32.mrb[0].mxu0
    %v1247 = vadd.f32 %v1137, %v1246
    %v1248 = vpop.f32.mrb[0].mxu0
    %v1249 = vadd.f32 %v1137, %v1248
    %1250 = vmatprep.mubr.f32.mxu0 0.0
    %1251 = vmatmul.mubr.f32.gmra.mrb[0].mxu0 %v102
    %v1252 = vpop.f32.mrb[0].mxu0
    %v1253 = vadd.f32 %v1142, %v1252
    %v1254 = vpop.f32.mrb[0].mxu0
    %v1255 = vadd.f32 %v1142, %v1254
    %1256 = vdwg.mxu0
    %v1257 = vsub.f32 0.0, %v1211
    %v1258 = vsub.f32 0.0, %v1213
    %v1259 = vsub.f32 0.0, %v1217
    %v1260 = vsub.f32 0.0, %v1219
    %v1261 = vsub.f32 0.0, %v1223
    %v1262 = vsub.f32 0.0, %v1225
    %v1263 = vsub.f32 0.0, %v1229
    %v1264 = vsub.f32 0.0, %v1231
    %v1265 = vsub.f32 0.0, %v1235
    %v1266 = vsub.f32 0.0, %v1237
    %v1267 = vsub.f32 0.0, %v1241
    %v1268 = vsub.f32 0.0, %v1243
    %v1269 = vsub.f32 0.0, %v1247
    %v1270 = vsub.f32 0.0, %v1249
    %v1271 = vsub.f32 0.0, %v1253
    %v1272 = vsub.f32 0.0, %v1255
    %v1273 = vmul.f32 %v1257, 1.442695
    %v1274 = vpow.pop %v1273
    %v1275 = vmul.f32 %v1258, 1.442695
    %v1276 = vpow.pop %v1275
    %v1277 = vmul.f32 %v1259, 1.442695
    %v1278 = vpow.pop %v1277
    %v1279 = vmul.f32 %v1260, 1.442695
    %v1280 = vpow.pop %v1279
    %v1281 = vmul.f32 %v1261, 1.442695
    %v1282 = vpow.pop %v1281
    %v1283 = vmul.f32 %v1262, 1.442695
    %v1284 = vpow.pop %v1283
    %v1285 = vmul.f32 %v1263, 1.442695
    %v1286 = vpow.pop %v1285
    %v1287 = vmul.f32 %v1264, 1.442695
    %v1288 = vpow.pop %v1287
    %v1289 = vmul.f32 %v1265, 1.442695
    %v1290 = vpow.pop %v1289
    %v1291 = vmul.f32 %v1266, 1.442695
    %v1292 = vpow.pop %v1291
    %v1293 = vmul.f32 %v1267, 1.442695
    %v1294 = vpow.pop %v1293
    %v1295 = vmul.f32 %v1268, 1.442695
    %v1296 = vpow.pop %v1295
    %v1297 = vmul.f32 %v1269, 1.442695
    %v1298 = vpow.pop %v1297
    %v1299 = vmul.f32 %v1270, 1.442695
    %v1300 = vpow.pop %v1299
    %v1301 = vmul.f32 %v1271, 1.442695
    %v1302 = vpow.pop %v1301
    %v1303 = vmul.f32 %v1272, 1.442695
    %v1304 = vpow.pop %v1303
    %v1305 = vadd.f32 %v1274, 1.0
    %v1306 = vadd.f32 %v1276, 1.0
    %v1307 = vadd.f32 %v1278, 1.0
    %v1308 = vadd.f32 %v1280, 1.0
    %v1309 = vadd.f32 %v1282, 1.0
    %v1310 = vadd.f32 %v1284, 1.0
    %v1311 = vadd.f32 %v1286, 1.0
    %v1312 = vadd.f32 %v1288, 1.0
    %v1313 = vadd.f32 %v1290, 1.0
    %v1314 = vadd.f32 %v1292, 1.0
    %v1315 = vadd.f32 %v1294, 1.0
    %v1316 = vadd.f32 %v1296, 1.0
    %v1317 = vadd.f32 %v1298, 1.0
    %v1318 = vadd.f32 %v1300, 1.0
    %v1319 = vadd.f32 %v1302, 1.0
    %v1320 = vadd.f32 %v1304, 1.0
    %v1321 = vrcp.pop %v1305
    %v1322 = vmul.f32 %v1211, %v1321
    %v1323 = vrcp.pop %v1306
    %v1324 = vmul.f32 %v1213, %v1323
    %v1325 = vrcp.pop %v1307
    %v1326 = vmul.f32 %v1217, %v1325
    %v1327 = vrcp.pop %v1308
    %v1328 = vmul.f32 %v1219, %v1327
    %v1329 = vrcp.pop %v1309
    %v1330 = vmul.f32 %v1223, %v1329
    %v1331 = vrcp.pop %v1310
    %v1332 = vmul.f32 %v1225, %v1331
    %v1333 = vrcp.pop %v1311
    %v1334 = vmul.f32 %v1229, %v1333
    %v1335 = vrcp.pop %v1312
    %v1336 = vmul.f32 %v1231, %v1335
    %v1337 = vrcp.pop %v1313
    %v1338 = vmul.f32 %v1235, %v1337
    %v1339 = vrcp.pop %v1314
    %v1340 = vmul.f32 %v1237, %v1339
    %v1341 = vrcp.pop %v1315
    %v1342 = vmul.f32 %v1241, %v1341
    %v1343 = vrcp.pop %v1316
    %v1344 = vmul.f32 %v1243, %v1343
    %v1345 = vrcp.pop %v1317
    %v1346 = vmul.f32 %v1247, %v1345
    %v1347 = vrcp.pop %v1318
    %v1348 = vmul.f32 %v1249, %v1347
    %v1349 = vrcp.pop %v1319
    %v1350 = vmul.f32 %v1253, %v1349
    %v1351 = vrcp.pop %v1320
    %v1352 = vmul.f32 %v1255, %v1351
    %s1353 = scalar_lea.vmem %s3, 24
    %v1354 = vld [vmem:[%s1353] sm:$0xff]
    %v1356 = vsel %vm314, %v1354, 0
    %1358 = vmatprep.subr.mxu0 %v1324
    %1359 = vmatpush1.msra.mxu0 %v1322
    %1360 = vmatprep.subr.mxu0 %v1328
    %1361 = vmatpush1.msra.mxu0 %v1326
    %1362 = vmatprep.subr.mxu0 %v1332
    %1363 = vmatpush1.msra.mxu0 %v1330
    %1364 = vmatprep.subr.mxu0 %v1336
    %1365 = vmatpush1.msra.mxu0 %v1334
    %1366 = vmatprep.subr.mxu0 %v1340
    %1367 = vmatpush1.msra.mxu0 %v1338
    %1368 = vmatprep.subr.mxu0 %v1344
    %1369 = vmatpush1.msra.mxu0 %v1342
    %1370 = vmatprep.subr.mxu0 %v1348
    %1371 = vmatpush1.msra.mxu0 %v1346
    %1372 = vmatprep.subr.mxu0 %v1352
    %1373 = vmatpush1.msra.mxu0 %v1350
    %1374 = vmatprep.subr.mxu0 0.0
    %1375 = vmatpush1.msra.mxu0 0.0
    %1376 = vmatprep.subr.mxu0 0.0
    %1377 = vmatpush1.msra.mxu0 0.0
    %1378 = vmatprep.subr.mxu0 0.0
    %1379 = vmatpush1.msra.mxu0 0.0
    %1380 = vmatprep.subr.mxu0 0.0
    %1381 = vmatpush1.msra.mxu0 0.0
    %1382 = vmatprep.subr.mxu0 0.0
    %1383 = vmatpush1.msra.mxu0 0.0
    %1384 = vmatprep.subr.mxu0 0.0
    %1385 = vmatpush1.msra.mxu0 0.0
    %1386 = vmatprep.subr.mxu0 0.0
    %1387 = vmatpush1.msra.mxu0 0.0
    %1388 = vmatprep.subr.mxu0 0.0
    %1389 = vmatpush1.msra.mxu0 0.0
    %1390 = vmatprep.subr.mxu0 0.0
    %1391 = vmatpush1.msra.mxu0 0.0
    %1392 = vmatprep.subr.mxu0 0.0
    %1393 = vmatpush1.msra.mxu0 0.0
    %1394 = vmatprep.subr.mxu0 0.0
    %1395 = vmatpush1.msra.mxu0 0.0
    %1396 = vmatprep.subr.mxu0 0.0
    %1397 = vmatpush1.msra.mxu0 0.0
    %1398 = vmatprep.subr.mxu0 0.0
    %1399 = vmatpush1.msra.mxu0 0.0
    %1400 = vmatprep.subr.mxu0 0.0
    %1401 = vmatpush1.msra.mxu0 0.0
    %1402 = vmatprep.subr.mxu0 0.0
    %1403 = vmatpush1.msra.mxu0 0.0
    %1404 = vmatprep.subr.mxu0 0.0
    %1405 = vmatpush1.msra.mxu0 0.0
    %1406 = vmatprep.subr.mxu0 0.0
    %1407 = vmatpush1.msra.mxu0 0.0
    %1408 = vmatprep.subr.mxu0 0.0
    %1409 = vmatpush1.msra.mxu0 0.0
    %1410 = vmatprep.subr.mxu0 0.0
    %1411 = vmatpush1.msra.mxu0 0.0
    %1412 = vmatprep.subr.mxu0 0.0
    %1413 = vmatpush1.msra.mxu0 0.0
    %1414 = vmatprep.subr.mxu0 0.0
    %1415 = vmatpush1.msra.mxu0 0.0
    %1416 = vmatprep.subr.mxu0 0.0
    %1417 = vmatpush1.msra.mxu0 0.0
    %1418 = vmatprep.subr.mxu0 0.0
    %1419 = vmatpush1.msra.mxu0 0.0
    %1420 = vmatprep.subr.mxu0 0.0
    %1421 = vmatpush1.msra.mxu0 0.0
    %1422 = vmatprep.mubr.f32.mxu0 0.0
    %1423 = vmatmul.mubr.f32.gmra.mrb[0].mxu0 %v1356
    %v1424 = vpop.f32.mrb[0].mxu0
    %v1425 = vadd.f32 0.0, %v1424
    %v1426 = vpop.f32.mrb[0].mxu0
    %v1427 = vadd.f32 0.0, %v1426
    %1428 = vdwg.mxu0
    %v1429 = vmul.f32 %v1093, 0.0
    %v1430 = vmul.f32 %v1094, 0.0
    %v1431 = vadd.f32 %v1429, %v1425
    %v1432 = vadd.f32 %v1430, %v1427
    %s1433 = scalar_lea.vmem %s4, 24
    %v1434 = vld [vmem:[%s1433] sm:$0xff]
    %1436 = vset.pattern.permute.xlu0 0
    %1437 = vperm.xlu0 %1436, %v1434
    %v1438 = vpop.permute.xlu0 %1437
    %v1440 = vadd.f32 %v1431, %v1438
    %v1441 = vadd.f32 %v1432, %v1438
    %1442 = vst [vmem:[#allocation2] sm:$0xff] %v1440
    %1443 = vst [vmem:[#allocation2 + $0x8] sm:$0xff] %v1441
    // Predicated region
    $region22: #{tpu_custom_call.1} parent=1 // pred_check
      _
    $region23: #{tpu_custom_call.1} parent=1 // pred_check_branch
      %1445 = sbr.rel (0) target = $region25
    $region24: #{tpu_custom_call.1} parent=1 // pred_region
      %s1447 = ssub.s32 256, 256
      %1448 = vsyncadd [#allocation3], %s1447
      %s1450 = sshll.u32 [#allocation2], 4
      %s1451 = int_to_ptr.vmem [resolvable:$true] %s1450
      %1453 = dma.vmem_to_hbm [thread:$0]  %s1451, 256, %s5, [#allocation3]
    $region25: #{tpu_custom_call.1} parent=1 // pred_fallthru
      _
    // Predicated region
    $region26: #{tpu_custom_call.1} parent=1 // pred_check
      _
    $region27: #{tpu_custom_call.1} parent=1 // pred_check_branch
      %1455 = sbr.rel (0) target = $region29
    $region28: #{tpu_custom_call.1} parent=1 // pred_region
      %1456 = dma.done [#allocation3], 256
    $region29: #{tpu_custom_call.1} parent=1 // pred_fallthru
      _
    %1457 = vsyncpa [#allocation3], 1

</llo_original>
